<compile_context>
chip_gen: v5e
topology: v5e:2x2
jax: 0.10.0
libtpu: 0.0.40
codegen_flags: <defaults>
</compile_context>

<pallas_src>
import functools
import math

import jax
import jax.numpy as jnp
from jax import lax
from jax.experimental import pallas as pl
from jax.experimental.pallas import tpu as pltpu


def _flash_mha_kernel(x_ref, wqs_ref, wk_ref, wv_ref, o_ref,
                      q_sc, m_sc, l_sc, acc_sc, *, tq, tkv):
    # x_ref:   (n, d_in)        current batch element (batch squeezed)
    # wqs_ref: (d_model, d_in)  Wq with 1/sqrt(d_model) folded in, bf16
    # wk_ref:  (d_model, d_in)  bf16
    # wv_ref:  (tkv, d_in)      rows of Wv for the current kv tile, bf16
    # o_ref:   (tq, n)
    qi = pl.program_id(1)
    ki = pl.program_id(2)
    n_kv = pl.num_programs(2)

    @pl.when(ki == 0)
    def _init():
        # Project this q-row tile once per (batch, q-tile); cache as bf16.
        q_start = pl.multiple_of(qi * tq, tq)
        x_q = x_ref[pl.ds(q_start, tq), :].astype(jnp.bfloat16)
        q = lax.dot_general(x_q, wqs_ref[...], (((1,), (1,)), ((), ())),
                            preferred_element_type=jnp.float32)   # (tq, d_model)
        q_sc[...] = q.astype(jnp.bfloat16)
        m_sc[...] = jnp.full(m_sc.shape, -jnp.inf, m_sc.dtype)
        l_sc[...] = jnp.zeros(l_sc.shape, l_sc.dtype)
        acc_sc[...] = jnp.zeros(acc_sc.shape, acc_sc.dtype)

    # K tile: rows of (x @ Wk^T) for this kv slice -> (tkv, d_model)
    k_start = pl.multiple_of(ki * tkv, tkv)
    x_kv = x_ref[pl.ds(k_start, tkv), :].astype(jnp.bfloat16)
    k_tile = lax.dot_general(x_kv, wk_ref[...], (((1,), (1,)), ((), ())),
                             preferred_element_type=jnp.float32)

    # "Value" tile of the permuted V: V_eff[k, j] = sum_d Wv[k, d] * x[j, d]
    # (row-slice k of (x @ Wv^T)^T) -> (tkv, n).  Needs all rows of x.
    x_all = x_ref[...].astype(jnp.bfloat16)                        # (n, d_in)
    v_eff = lax.dot_general(wv_ref[...], x_all, (((1,), (1,)), ((), ())),
                            preferred_element_type=jnp.float32)    # (tkv, n)

    # Scores: scale already folded into Wq.  s[i,k] = sum_m q[i,m] * k[k,m]
    s = lax.dot_general(q_sc[...], k_tile.astype(jnp.bfloat16),
                        (((1,), (1,)), ((), ())),
                        preferred_element_type=jnp.float32)        # (tq, tkv)

    # Online softmax (f32 math); normalization deferred to the last kv step.
    m_prev = m_sc[...]
    m_new = jnp.maximum(m_prev, jnp.max(s, axis=-1, keepdims=True))
    alpha = jnp.exp(m_prev - m_new)
    p = jnp.exp(s - m_new)                                          # (tq, tkv)
    l_sc[...] = alpha * l_sc[...] + jnp.sum(p, axis=-1, keepdims=True)
    m_sc[...] = m_new

    # out[i, j] += sum_k p[i, k] * V_eff[k, j]
    pv = lax.dot_general(p.astype(jnp.bfloat16), v_eff.astype(jnp.bfloat16),
                         (((1,), (0,)), ((), ())),
                         preferred_element_type=jnp.float32)        # (tq, n)
    acc_sc[...] = alpha * acc_sc[...] + pv

    @pl.when(ki == n_kv - 1)
    def _finalize():
        inv_l = pl.reciprocal(l_sc[...], approx=True)               # EUP slot
        o_ref[...] = (acc_sc[...] * inv_l).astype(o_ref.dtype)


def _vmem_limit_bytes(*, n, d_in, d_model, tq, tkv, io_bytes):
    dbl = 2  # default double-buffering of pipelined blocks
    x_blk = n * d_in * io_bytes * dbl
    w_blk = 2 * d_model * d_in * 2 * dbl + tkv * d_in * 2 * dbl     # bf16
    out_blk = tq * n * io_bytes * dbl
    scratch = tq * d_model * 2 + 2 * tq * 128 * 4 + tq * n * 4
    total = x_blk + w_blk + out_blk + scratch
    # 2x headroom for compiler temporaries; clamp to [16 MiB, 64 MiB]
    # (v7x physical VMEM is 64 MiB; v5e/v6e have 128 MiB).
    return int(min(64 * 2 ** 20, max(2 * total, 16 * 2 ** 20)))


def multi_head_attention(x, wq, wk, wv, *, tq=None, tkv=None):
    """x: (B, n, d_in); wq/wk: (d_model, d_in); wv: (d_in, d_in) -> (B, n, n)."""
    B, n, d_in = x.shape
    d_model = wq.shape[0]
    assert wq.shape == (d_model, d_in) and wk.shape == (d_model, d_in)
    assert wv.shape == (d_in, d_in)
    assert n == d_in, "torch's final matmul (attn @ v.permute) needs n == d_in"
    # Lane-dense layout: every last dim a multiple of 128.
    assert n % 128 == 0 and d_in % 128 == 0 and d_model % 128 == 0, (
        "choose n, d_in, d_model as multiples of 128 (pad otherwise)")

    # v6e/v7x MXU is 256 rows tall -> default 256-row q tiles; 128 is already
    # enough to saturate v5e's 128x128 MXU.
    if tq is None:
        tq = min(n, 256)
    if tkv is None:
        tkv = min(n, 512)
    assert n % tq == 0 and n % tkv == 0
    assert tq % 128 == 0 and tkv % 128 == 0

    # Weight prep (trace time): bf16 MXU operands, scale folded into Wq.
    scale = 1.0 / math.sqrt(d_model)
    wq_s = (wq * scale).astype(jnp.bfloat16)
    wk_b = wk.astype(jnp.bfloat16)
    wv_b = wv.astype(jnp.bfloat16)

    kernel = functools.partial(_flash_mha_kernel, tq=tq, tkv=tkv)
    vmem_limit = _vmem_limit_bytes(n=n, d_in=d_in, d_model=d_model,
                                   tq=tq, tkv=tkv, io_bytes=x.dtype.itemsize)

    return pl.pallas_call(
        kernel,
        out_shape=jax.ShapeDtypeStruct((B, n, n), x.dtype),
        grid_spec=pltpu.PrefetchScalarGridSpec(
            num_scalar_prefetch=0,
            grid=(B, n // tq, n // tkv),
            in_specs=[
                # x: full per-batch block (all rows needed for the permuted-V
                # tile); batch dim squeezed out of the kernel ref.  Block index
                # only changes with b, so it is DMA'd once per batch element.
                pl.BlockSpec((None, n, d_in), lambda b, qi, ki: (b, 0, 0)),
                # Grid-invariant projection weights (bf16, scale pre-folded).
                # TODO(synk): pipeline_mode=pl.Buffered(1) would drop the
                # unused second pipeline buffer for these (v7x VMEM headroom).
                pl.BlockSpec((d_model, d_in), lambda b, qi, ki: (0, 0)),
                pl.BlockSpec((d_model, d_in), lambda b, qi, ki: (0, 0)),
                # Wv rows for the current kv tile.
                pl.BlockSpec((tkv, d_in), lambda b, qi, ki: (ki, 0)),
            ],
            out_specs=pl.BlockSpec((None, tq, n), lambda b, qi, ki: (b, qi, 0)),
            scratch_shapes=[
                pltpu.VMEM((tq, d_model), jnp.bfloat16),   # cached q tile
                pltpu.VMEM((tq, 1), jnp.float32),          # running max m
                pltpu.VMEM((tq, 1), jnp.float32),          # running sum l
                pltpu.VMEM((tq, n), jnp.float32),          # output accumulator
            ],
        ),
        compiler_params=pltpu.CompilerParams(
            dimension_semantics=("parallel", "parallel", "arbitrary"),
            vmem_limit_bytes=vmem_limit,
        ),
    )(x, wq_s, wk_b, wv_b)


def reference(x, wq, wk, wv):
    q = jnp.einsum("bnd,md->bnm", x, wq)
    k = jnp.einsum("bnd,md->bnm", x, wk)
    v = jnp.einsum("bnd,ed->bne", x, wv)
    qk = jnp.einsum("bnm,bkm->bnk", q, k) / math.sqrt(q.shape[-1])
    attn = jax.nn.softmax(qk, axis=-1)
    return jnp.einsum("bnk,bek->bne", attn, v)          # attn @ v.permute(0,2,1)


if __name__ == "__main__":
    # Small but lane-dense, consistent with the module (n must equal d_in),
    # and big enough to exercise multiple q-row and kv tiles (grid 2x2x2).
    B, n, d_in, d_model, num_heads = 2, 256, 256, 256, 4  # d_k unused in fwd

    key = jax.random.PRNGKey(0)
    kx, kq, kk, kv = jax.random.split(key, 4)

    x = jax.random.normal(kx, (B, n, d_in), dtype=jnp.float32)

    # PyTorch-Linear-style init: U(-1/sqrt(fan_in), 1/sqrt(fan_in)),
    # weights stored as (out_features, in_features).
    bound = 1.0 / math.sqrt(d_in)
    wq = jax.random.uniform(kq, (d_model, d_in), jnp.float32, -bound, bound)
    wk = jax.random.uniform(kk, (d_model, d_in), jnp.float32, -bound, bound)
    wv = jax.random.uniform(kv, (d_in, d_in), jnp.float32, -bound, bound)

    out = multi_head_attention(x, wq, wk, wv, tq=128, tkv=128)
    out = jax.block_until_ready(out)

    ref = reference(x, wq, wk, wv)
    assert out.shape == (B, n, n)
    # bf16 MXU operands + approx reciprocal -> loosened tolerance vs f32 ref.
    assert jnp.allclose(out, ref, atol=2e-2, rtol=2e-2), "mismatch vs reference"

    print("KERNEL_OK")
</pallas_src>

<mosaic_0001>
module attributes {stable_mosaic.version = 11 : i64} {
  func.func @_flash_mha_kernel(%arg0: i32, %arg1: i32, %arg2: i32, %arg3: memref<1x256x256xf32, #tpu.memory_space<vmem>>, %arg4: memref<256x256xbf16, #tpu.memory_space<vmem>>, %arg5: memref<256x256xbf16, #tpu.memory_space<vmem>>, %arg6: memref<128x256xbf16, #tpu.memory_space<vmem>>, %arg7: memref<1x128x256xf32, #tpu.memory_space<vmem>>, %arg8: memref<128x256xbf16, #tpu.memory_space<vmem>>, %arg9: memref<128x1xf32, #tpu.memory_space<vmem>>, %arg10: memref<128x1xf32, #tpu.memory_space<vmem>>, %arg11: memref<128x256xf32, #tpu.memory_space<vmem>>) attributes {dimension_semantics = [#tpu.dimension_semantics<parallel>, #tpu.dimension_semantics<parallel>, #tpu.dimension_semantics<arbitrary>], iteration_bounds = array<i64: 2, 2, 2>, scalar_prefetch = 0 : i64, scratch_operands = 4 : i64, tpu.core_type = #tpu.core_type<tc>, window_params = [{transform_indices = @transform_0, window_bounds = array<i64: 1, 256, 256>}, {pipeline_mode = #tpu.pipeline_mode<synchronous>, transform_indices = @transform_1, window_bounds = array<i64: 256, 256>}, {pipeline_mode = #tpu.pipeline_mode<synchronous>, transform_indices = @transform_2, window_bounds = array<i64: 256, 256>}, {transform_indices = @transform_3, window_bounds = array<i64: 128, 256>}, {transform_indices = @transform_4, window_bounds = array<i64: 1, 128, 256>}]} {
    %c0_i32 = arith.constant 0 : i32
    %0 = arith.cmpi eq, %arg2, %c0_i32 : i32
    %1 = arith.extui %0 : i1 to i32
    %c0_i32_0 = arith.constant 0 : i32
    %2 = arith.cmpi ne, %1, %c0_i32_0 : i32
    scf.if %2 {
      %c128_i32_29 = arith.constant 128 : i32
      %46 = arith.muli %arg1, %c128_i32_29 : i32
      %47 = tpu.assume_multiple %46, 128 : i32
      %c0_30 = arith.constant 0 : index
      %48 = arith.index_cast %47 : i32 to index
      %c0_31 = arith.constant 0 : index
      %49 = vector.load %arg3[%c0_30, %48, %c0_31] : memref<1x256x256xf32, #tpu.memory_space<vmem>>, vector<1x128x256xf32>
      %50 = vector.shape_cast %49 : vector<1x128x256xf32> to vector<128x256xf32>
      %51 = arith.truncf %50 : vector<128x256xf32> to vector<128x256xbf16>
      %c0_32 = arith.constant 0 : index
      %c0_33 = arith.constant 0 : index
      %52 = vector.load %arg4[%c0_32, %c0_33] : memref<256x256xbf16, #tpu.memory_space<vmem>>, vector<256x256xbf16>
      %cst_34 = arith.constant dense<0.000000e+00> : vector<128x256xf32>
      %53 = tpu.matmul %51, %52, %cst_34 {dimension_numbers = #tpu.dot_dimension_numbers<[1], [1], [0], [0], [0, 0, 1, 0], [], []>} : vector<128x256xbf16>, vector<256x256xbf16>, vector<128x256xf32> -> vector<128x256xf32>
      %54 = arith.truncf %53 : vector<128x256xf32> to vector<128x256xbf16>
      %c0_35 = arith.constant 0 : index
      %c0_36 = arith.constant 0 : index
      %55 = vector.load %arg8[%c0_35, %c0_36] : memref<128x256xbf16, #tpu.memory_space<vmem>>, vector<128x256xbf16>
      tpu.vector_store %arg8[%c0_35, %c0_36], %54 {strides = array<i32>} : memref<128x256xbf16, #tpu.memory_space<vmem>>, vector<128x256xbf16>,
      %cst_37 = arith.constant 0xFF800000 : f32
      %56 = vector.broadcast %cst_37 : f32 to vector<128x1xf32>
      %c0_38 = arith.constant 0 : index
      %c0_39 = arith.constant 0 : index
      %57 = vector.load %arg9[%c0_38, %c0_39] : memref<128x1xf32, #tpu.memory_space<vmem>>, vector<128x1xf32>
      tpu.vector_store %arg9[%c0_38, %c0_39], %56 {strides = array<i32>} : memref<128x1xf32, #tpu.memory_space<vmem>>, vector<128x1xf32>,
      %cst_40 = arith.constant 0.000000e+00 : f32
      %58 = vector.broadcast %cst_40 : f32 to vector<128x1xf32>
      %c0_41 = arith.constant 0 : index
      %c0_42 = arith.constant 0 : index
      %59 = vector.load %arg10[%c0_41, %c0_42] : memref<128x1xf32, #tpu.memory_space<vmem>>, vector<128x1xf32>
      tpu.vector_store %arg10[%c0_41, %c0_42], %58 {strides = array<i32>} : memref<128x1xf32, #tpu.memory_space<vmem>>, vector<128x1xf32>,
      %cst_43 = arith.constant 0.000000e+00 : f32
      %60 = vector.broadcast %cst_43 : f32 to vector<128x256xf32>
      %c0_44 = arith.constant 0 : index
      %c0_45 = arith.constant 0 : index
      %61 = vector.load %arg11[%c0_44, %c0_45] : memref<128x256xf32, #tpu.memory_space<vmem>>, vector<128x256xf32>
      tpu.vector_store %arg11[%c0_44, %c0_45], %60 {strides = array<i32>} : memref<128x256xf32, #tpu.memory_space<vmem>>, vector<128x256xf32>,
    } else {
    }
    %c128_i32 = arith.constant 128 : i32
    %3 = arith.muli %arg2, %c128_i32 : i32
    %4 = tpu.assume_multiple %3, 128 : i32
    %c0 = arith.constant 0 : index
    %5 = arith.index_cast %4 : i32 to index
    %c0_1 = arith.constant 0 : index
    %6 = vector.load %arg3[%c0, %5, %c0_1] : memref<1x256x256xf32, #tpu.memory_space<vmem>>, vector<1x128x256xf32>
    %7 = vector.shape_cast %6 : vector<1x128x256xf32> to vector<128x256xf32>
    %8 = arith.truncf %7 : vector<128x256xf32> to vector<128x256xbf16>
    %c0_2 = arith.constant 0 : index
    %c0_3 = arith.constant 0 : index
    %9 = vector.load %arg5[%c0_2, %c0_3] : memref<256x256xbf16, #tpu.memory_space<vmem>>, vector<256x256xbf16>
    %cst = arith.constant dense<0.000000e+00> : vector<128x256xf32>
    %10 = tpu.matmul %8, %9, %cst {dimension_numbers = #tpu.dot_dimension_numbers<[1], [1], [0], [0], [0, 0, 1, 0], [], []>} : vector<128x256xbf16>, vector<256x256xbf16>, vector<128x256xf32> -> vector<128x256xf32>
    %c0_4 = arith.constant 0 : index
    %c0_5 = arith.constant 0 : index
    %c0_6 = arith.constant 0 : index
    %11 = vector.load %arg3[%c0_4, %c0_5, %c0_6] : memref<1x256x256xf32, #tpu.memory_space<vmem>>, vector<1x256x256xf32>
    %12 = vector.shape_cast %11 : vector<1x256x256xf32> to vector<256x256xf32>
    %13 = arith.truncf %12 : vector<256x256xf32> to vector<256x256xbf16>
    %c0_7 = arith.constant 0 : index
    %c0_8 = arith.constant 0 : index
    %14 = vector.load %arg6[%c0_7, %c0_8] : memref<128x256xbf16, #tpu.memory_space<vmem>>, vector<128x256xbf16>
    %cst_9 = arith.constant dense<0.000000e+00> : vector<128x256xf32>
    %15 = tpu.matmul %14, %13, %cst_9 {dimension_numbers = #tpu.dot_dimension_numbers<[1], [1], [0], [0], [0, 0, 1, 0], [], []>} : vector<128x256xbf16>, vector<256x256xbf16>, vector<128x256xf32> -> vector<128x256xf32>
    %c0_10 = arith.constant 0 : index
    %c0_11 = arith.constant 0 : index
    %16 = vector.load %arg8[%c0_10, %c0_11] : memref<128x256xbf16, #tpu.memory_space<vmem>>, vector<128x256xbf16>
    %17 = arith.truncf %10 : vector<128x256xf32> to vector<128x256xbf16>
    %cst_12 = arith.constant dense<0.000000e+00> : vector<128x128xf32>
    %18 = tpu.matmul %16, %17, %cst_12 {dimension_numbers = #tpu.dot_dimension_numbers<[1], [1], [0], [0], [0, 0, 1, 0], [], []>} : vector<128x256xbf16>, vector<128x256xbf16>, vector<128x128xf32> -> vector<128x128xf32>
    %c0_13 = arith.constant 0 : index
    %c0_14 = arith.constant 0 : index
    %19 = vector.load %arg9[%c0_13, %c0_14] : memref<128x1xf32, #tpu.memory_space<vmem>>, vector<128x1xf32>
    %cst_15 = arith.constant dense<0xFF800000> : vector<128xf32>
    %20 = vector.multi_reduction <maximumf>, %18, %cst_15 [1] : vector<128x128xf32> to vector<128xf32>
    %21 = vector.shape_cast %20 : vector<128xf32> to vector<128x1xf32>
    %22 = arith.maximumf %19, %21 : vector<128x1xf32>
    %23 = arith.subf %19, %22 : vector<128x1xf32>
    %24 = math.exp %23 : vector<128x1xf32>
    %25 = vector.broadcast %22 : vector<128x1xf32> to vector<128x128xf32>
    %26 = arith.subf %18, %25 : vector<128x128xf32>
    %27 = math.exp %26 : vector<128x128xf32>
    %c0_16 = arith.constant 0 : index
    %c0_17 = arith.constant 0 : index
    %28 = vector.load %arg10[%c0_16, %c0_17] : memref<128x1xf32, #tpu.memory_space<vmem>>, vector<128x1xf32>
    %29 = arith.mulf %24, %28 : vector<128x1xf32>
    %cst_18 = arith.constant dense<0.000000e+00> : vector<128xf32>
    %30 = vector.multi_reduction <add>, %27, %cst_18 [1] : vector<128x128xf32> to vector<128xf32>
    %31 = vector.shape_cast %30 : vector<128xf32> to vector<128x1xf32>
    %32 = arith.addf %29, %31 : vector<128x1xf32>
    %c0_19 = arith.constant 0 : index
    %c0_20 = arith.constant 0 : index
    %33 = vector.load %arg10[%c0_19, %c0_20] : memref<128x1xf32, #tpu.memory_space<vmem>>, vector<128x1xf32>
    tpu.vector_store %arg10[%c0_19, %c0_20], %32 {strides = array<i32>} : memref<128x1xf32, #tpu.memory_space<vmem>>, vector<128x1xf32>,
    %c0_21 = arith.constant 0 : index
    %c0_22 = arith.constant 0 : index
    %34 = vector.load %arg9[%c0_21, %c0_22] : memref<128x1xf32, #tpu.memory_space<vmem>>, vector<128x1xf32>
    tpu.vector_store %arg9[%c0_21, %c0_22], %22 {strides = array<i32>} : memref<128x1xf32, #tpu.memory_space<vmem>>, vector<128x1xf32>,
    %35 = arith.truncf %27 : vector<128x128xf32> to vector<128x128xbf16>
    %36 = arith.truncf %15 : vector<128x256xf32> to vector<128x256xbf16>
    %cst_23 = arith.constant dense<0.000000e+00> : vector<128x256xf32>
    %37 = tpu.matmul %35, %36, %cst_23 {dimension_numbers = #tpu.dot_dimension_numbers<[1], [0], [0], [1], [0, 0, 1, 1], [], []>} : vector<128x128xbf16>, vector<128x256xbf16>, vector<128x256xf32> -> vector<128x256xf32>
    %c0_24 = arith.constant 0 : index
    %c0_25 = arith.constant 0 : index
    %38 = vector.load %arg11[%c0_24, %c0_25] : memref<128x256xf32, #tpu.memory_space<vmem>>, vector<128x256xf32>
    %39 = vector.broadcast %24 : vector<128x1xf32> to vector<128x256xf32>
    %40 = arith.mulf %39, %38 : vector<128x256xf32>
    %41 = arith.addf %40, %37 : vector<128x256xf32>
    %c0_26 = arith.constant 0 : index
    %c0_27 = arith.constant 0 : index
    %42 = vector.load %arg11[%c0_26, %c0_27] : memref<128x256xf32, #tpu.memory_space<vmem>>, vector<128x256xf32>
    tpu.vector_store %arg11[%c0_26, %c0_27], %41 {strides = array<i32>} : memref<128x256xf32, #tpu.memory_space<vmem>>, vector<128x256xf32>,
    %c1_i32 = arith.constant 1 : i32
    %43 = arith.cmpi eq, %arg2, %c1_i32 : i32
    %44 = arith.extui %43 : i1 to i32
    %c0_i32_28 = arith.constant 0 : i32
    %45 = arith.cmpi ne, %44, %c0_i32_28 : i32
    scf.if %45 {
      %c0_29 = arith.constant 0 : index
      %c0_30 = arith.constant 0 : index
      %46 = vector.load %arg10[%c0_29, %c0_30] : memref<128x1xf32, #tpu.memory_space<vmem>>, vector<128x1xf32>
      %47 = tpu.reciprocal %46 {approx = true} : vector<128x1xf32> -> vector<128x1xf32>
      %c0_31 = arith.constant 0 : index
      %c0_32 = arith.constant 0 : index
      %48 = vector.load %arg11[%c0_31, %c0_32] : memref<128x256xf32, #tpu.memory_space<vmem>>, vector<128x256xf32>
      %49 = vector.broadcast %47 : vector<128x1xf32> to vector<128x256xf32>
      %50 = arith.mulf %48, %49 : vector<128x256xf32>
      %c0_33 = arith.constant 0 : index
      %c0_34 = arith.constant 0 : index
      %c0_35 = arith.constant 0 : index
      %51 = vector.load %arg7[%c0_33, %c0_34, %c0_35] : memref<1x128x256xf32, #tpu.memory_space<vmem>>, vector<1x128x256xf32>
      %52 = vector.shape_cast %51 : vector<1x128x256xf32> to vector<128x256xf32>
      %53 = vector.shape_cast %50 : vector<128x256xf32> to vector<1x128x256xf32>
      tpu.vector_store %arg7[%c0_33, %c0_34, %c0_35], %53 {strides = array<i32>} : memref<1x128x256xf32, #tpu.memory_space<vmem>>, vector<1x128x256xf32>,
    } else {
    }
    return
  }
  func.func @transform_0(%arg0: i32, %arg1: i32, %arg2: i32) -> (i32, i32, i32) {
    %c0_i32 = arith.constant 0 : i32
    %c0_i32_0 = arith.constant 0 : i32
    %c0_i32_1 = arith.constant 0 : i32
    return %arg0, %c0_i32, %c0_i32_0 : i32, i32, i32
  }
  func.func @transform_1(%arg0: i32, %arg1: i32, %arg2: i32) -> (i32, i32) {
    %c0_i32 = arith.constant 0 : i32
    %c0_i32_0 = arith.constant 0 : i32
    %c0_i32_1 = arith.constant 0 : i32
    return %c0_i32, %c0_i32_0 : i32, i32
  }
  func.func @transform_2(%arg0: i32, %arg1: i32, %arg2: i32) -> (i32, i32) {
    %c0_i32 = arith.constant 0 : i32
    %c0_i32_0 = arith.constant 0 : i32
    %c0_i32_1 = arith.constant 0 : i32
    return %c0_i32, %c0_i32_0 : i32, i32
  }
  func.func @transform_3(%arg0: i32, %arg1: i32, %arg2: i32) -> (i32, i32) {
    %c0_i32 = arith.constant 0 : i32
    %c0_i32_0 = arith.constant 0 : i32
    return %arg2, %c0_i32 : i32, i32
  }
  func.func @transform_4(%arg0: i32, %arg1: i32, %arg2: i32) -> (i32, i32, i32) {
    %c0_i32 = arith.constant 0 : i32
    %c0_i32_0 = arith.constant 0 : i32
    return %arg0, %arg1, %c0_i32 : i32, i32, i32
  }
}

</mosaic_0001>

<llo_original>
// kernel: tpu_custom_call.1
$region0: #{tpu_custom_call.1}
  #allocation0 [shape = 'u32[]', space=smem, size = 0x4, offset = 0x4, fixed_abs, tag = 'smem constant byte address 0x4 - core index']
  #allocation1 [shape = 'u32[72,128]{1,0:T(1,128)}', space=vmem, size = 0x9000, scoped, tag = 'internal scratch']
  #allocation2 [shape = 'bf16[128,256]{1,0:T(8,128)(2,1)}', space=vmem, size = 0x10000, scoped, tag = 'scratch operand']
  #allocation3 [shape = 'f32[128,1]{1,0:T(8,128)}', space=vmem, size = 0x10000, scoped, tag = 'scratch operand']
  #allocation4 [shape = 'f32[128,1]{1,0:T(8,128)}', space=vmem, size = 0x10000, scoped, tag = 'scratch operand']
  #allocation5 [shape = 'f32[128,256]{1,0:T(8,128)}', space=vmem, size = 0x20000, scoped, tag = 'scratch operand']
  %s0 = inlined_call_operand.hbm [shape: f32[2,256,256], index: 0, kind: input, shape index: {}]
  %s1 = inlined_call_operand.hbm [shape: bf16[256,256], index: 1, kind: input, shape index: {}]
  %s2 = inlined_call_operand.hbm [shape: bf16[256,256], index: 2, kind: input, shape index: {}]
  %s3 = inlined_call_operand.hbm [shape: bf16[256,256], index: 3, kind: input, shape index: {}]
  %s4 = inlined_call_operand.hbm [shape: f32[2,256,256], index: 4, kind: output, shape index: {}]
  %s5 = sld [smem:[#allocation0]]
  $region73: #{tpu_custom_call.1} parent=0
    _
  %s7 = ssub.s32 1, %s5
  %s8 = scalar_select 0, %s7, %s5
  $region1: #{tpu_custom_call.1} parent=0
    #allocation6 [shape = 'u8[524288]{0}', space=vmem, size = 0x80000, scoped, tag = 'input window, operand 0']
    #allocation7 [shape = 's32[2]{0}', space=sflag, size = 0x8, scoped, tag = 'scoped memory for tpu_custom_call.1']
    #allocation8 [shape = 's32[2]{0}', space=sflag, size = 0x8, scoped, tag = 'scoped memory for tpu_custom_call.1']
    #allocation9 [shape = 'u8[131072]{0}', space=vmem, size = 0x20000, scoped, tag = 'input window, operand 1, single buffered']
    #allocation10 [shape = 's32[1]{0}', space=sflag, size = 0x4, scoped, tag = 'scoped memory for tpu_custom_call.1']
    #allocation11 [shape = 'u8[131072]{0}', space=vmem, size = 0x20000, scoped, tag = 'input window, operand 2, single buffered']
    #allocation12 [shape = 'u8[131072]{0}', space=vmem, size = 0x20000, scoped, tag = 'input window, operand 3']
    #allocation13 [shape = 's32[2]{0}', space=sflag, size = 0x8, scoped, tag = 'scoped memory for tpu_custom_call.1']
    #allocation14 [shape = 'u8[262144]{0}', space=vmem, size = 0x40000, scoped, tag = 'output window, operand 0']
    %9 = vsyncpa [#allocation7], 0
    %s10 = scalar_lea.sflag [#allocation7], 1
    %11 = vsyncpa %s10, 0
    %12 = vsyncpa [#allocation10], 0
    %13 = vsyncpa [#allocation13], 0
    %s14 = scalar_lea.sflag [#allocation13], 1
    %15 = vsyncpa %s14, 0
    %16 = vsyncpa [#allocation8], 0
    %s17 = scalar_lea.sflag [#allocation8], 1
    %18 = vsyncpa %s17, 0
    loop: start=0, step=1, limit=10
    $region2: #{tpu_custom_call.1} parent=1 // loop_pre_header
      _
    $region3: #{tpu_custom_call.1} parent=1 // loop_header
      %s20 = sphi 0, %s24
      %p21 = scmp.ge.s32.totalorder %s20, 10
      %s27 = sphi 0, %s46
      %s28 = sphi 0, %s42
      %s29 = sphi 0, %s38
      %s30 = sphi 0, %s27
      %s31 = sphi 0, %s28
      %s32 = sphi 0, %s29
      %s33 = sphi 0, %s30
      %s34 = sphi 0, %s31
      %s35 = sphi 0, %s32
      %s49 = sphi 0, %s51
      %s52 = sphi 0, %s49
      %s53 = sphi 0, %s52
      %s69 = sphi 0, %s53
      %s73 = sphi 0, %s73
      %s75 = sphi 0, %s73
      %s76 = sphi 0, %s75
      %s90 = sphi 0, %s76
      %s94 = sphi 0, %s94
      %s96 = sphi 0, %s94
      %s97 = sphi 0, %s96
      %s111 = sphi 0, %s97
      %s117 = sphi 0, %s119
      %s120 = sphi 0, %s117
      %s121 = sphi 0, %s120
      %s137 = sphi 0, %s121
      %s145 = sphi 0, %s147
      %s148 = sphi 0, %s145
      %s149 = sphi 0, %s148
      %s165 = sphi 0, %s149
    $region4: #{tpu_custom_call.1} parent=1 // loop_header_branch
      %23 = sbr.rel (%p21) target = $region8
    $region5: #{tpu_custom_call.1} parent=1 // loop_body
      %s25 = ssub.s32 %s20, 1
      %s26 = ssub.s32 %s20, 2
      %s36 = sadd.s32 1, %s29
      %p37 = scmp.ge.s32.totalorder %s36, 2
      %s38 = scalar_select %p37, 0, %s36
      %s39 = sadd.s32 1, %s28
      %s40 = scalar_select %p37, %s39, %s28
      %p41 = scmp.ge.s32.totalorder %s40, 2
      %s42 = scalar_select %p41, 0, %s40
      %s43 = sadd.s32 1, %s27
      %s44 = scalar_select %p41, %s43, %s27
      %p45 = scmp.ge.s32.totalorder %s44, 2
      %s46 = scalar_select %p45, 0, %s44
      %s47 = ssub.s32 %s27, %s46
      %p48 = scmp.eq.s32.totalorder %s47, 0
      %s50 = sadd.s32 %s49, 1
      %s51 = scalar_select %p48, %s49, %s50
      %p54 = pneg %p48
      %p55 = scmp.eq.s32.totalorder %s20, 7
      %p56 = por %p54, %p55
      %p57 = scmp.ne.s32.totalorder %s49, %s52
      %p58 = scmp.eq.s32.totalorder %s20, 0
      %p59 = por %p57, %p58
      %p60 = scmp.ne.s32.totalorder %s49, %s52
      %p61 = scmp.eq.s32.totalorder %s25, 7
      %p62 = por %p60, %p61
      %p63 = scmp.ne.s32.totalorder %s52, %s53
      %p64 = scmp.eq.s32.totalorder %s25, 0
      %p65 = por %p63, %p64
      %p66 = scmp.ne.s32.totalorder %s52, %s53
      %p67 = scmp.eq.s32.totalorder %s26, 7
      %p68 = por %p66, %p67
      %p70 = scmp.ne.s32.totalorder %s53, %s69
      %p71 = scmp.eq.s32.totalorder %s26, 0
      %p72 = por %p70, %p71
      %s74 = sadd.s32 %s73, 1
      %p77 = scmp.eq.s32.totalorder %s20, 7
      %p78 = scmp.ne.s32.totalorder %s73, %s75
      %p79 = scmp.eq.s32.totalorder %s20, 0
      %p80 = por %p78, %p79
      %p81 = scmp.ne.s32.totalorder %s73, %s75
      %p82 = scmp.eq.s32.totalorder %s25, 7
      %p83 = por %p81, %p82
      %p84 = scmp.ne.s32.totalorder %s75, %s76
      %p85 = scmp.eq.s32.totalorder %s25, 0
      %p86 = por %p84, %p85
      %p87 = scmp.ne.s32.totalorder %s75, %s76
      %p88 = scmp.eq.s32.totalorder %s26, 7
      %p89 = por %p87, %p88
      %p91 = scmp.ne.s32.totalorder %s76, %s90
      %p92 = scmp.eq.s32.totalorder %s26, 0
      %p93 = por %p91, %p92
      %s95 = sadd.s32 %s94, 1
      %p98 = scmp.eq.s32.totalorder %s20, 7
      %p99 = scmp.ne.s32.totalorder %s94, %s96
      %p100 = scmp.eq.s32.totalorder %s20, 0
      %p101 = por %p99, %p100
      %p102 = scmp.ne.s32.totalorder %s94, %s96
      %p103 = scmp.eq.s32.totalorder %s25, 7
      %p104 = por %p102, %p103
      %p105 = scmp.ne.s32.totalorder %s96, %s97
      %p106 = scmp.eq.s32.totalorder %s25, 0
      %p107 = por %p105, %p106
      %p108 = scmp.ne.s32.totalorder %s96, %s97
      %p109 = scmp.eq.s32.totalorder %s26, 7
      %p110 = por %p108, %p109
      %p112 = scmp.ne.s32.totalorder %s97, %s111
      %p113 = scmp.eq.s32.totalorder %s26, 0
      %p114 = por %p112, %p113
      %s115 = ssub.s32 %s29, %s38
      %p116 = scmp.eq.s32.totalorder %s115, 0
      %s118 = sadd.s32 %s117, 1
      %s119 = scalar_select %p116, %s117, %s118
      %p122 = pneg %p116
      %p123 = scmp.eq.s32.totalorder %s20, 7
      %p124 = por %p122, %p123
      %p125 = scmp.ne.s32.totalorder %s117, %s120
      %p126 = scmp.eq.s32.totalorder %s20, 0
      %p127 = por %p125, %p126
      %p128 = scmp.ne.s32.totalorder %s117, %s120
      %p129 = scmp.eq.s32.totalorder %s25, 7
      %p130 = por %p128, %p129
      %p131 = scmp.ne.s32.totalorder %s120, %s121
      %p132 = scmp.eq.s32.totalorder %s25, 0
      %p133 = por %p131, %p132
      %p134 = scmp.ne.s32.totalorder %s120, %s121
      %p135 = scmp.eq.s32.totalorder %s26, 7
      %p136 = por %p134, %p135
      %p138 = scmp.ne.s32.totalorder %s121, %s137
      %p139 = scmp.eq.s32.totalorder %s26, 0
      %p140 = por %p138, %p139
      %s141 = ssub.s32 %s27, %s46
      %s142 = ssub.s32 %s28, %s42
      %s143 = sor.u32 %s141, %s142
      %p144 = scmp.eq.s32.totalorder %s143, 0
      %s146 = sadd.s32 %s145, 1
      %s147 = scalar_select %p144, %s145, %s146
      %p150 = pneg %p144
      %p151 = scmp.eq.s32.totalorder %s20, 7
      %p152 = por %p150, %p151
      %p153 = scmp.ne.s32.totalorder %s145, %s148
      %p154 = scmp.eq.s32.totalorder %s20, 0
      %p155 = por %p153, %p154
      %p156 = scmp.ne.s32.totalorder %s145, %s148
      %p157 = scmp.eq.s32.totalorder %s25, 7
      %p158 = por %p156, %p157
      %p159 = scmp.ne.s32.totalorder %s148, %s149
      %p160 = scmp.eq.s32.totalorder %s25, 0
      %p161 = por %p159, %p160
      %p162 = scmp.ne.s32.totalorder %s148, %s149
      %p163 = scmp.eq.s32.totalorder %s26, 7
      %p164 = por %p162, %p163
      %p166 = scmp.ne.s32.totalorder %s149, %s165
      %p167 = scmp.eq.s32.totalorder %s26, 0
      %p168 = por %p166, %p167
      %p169 = scmp.le.s32.totalorder 1, %s20
      %p170 = scmp.lt.s32.totalorder %s20, 9
      %p171 = pnand %p169, %p170
      %p172 = pneg %p171
      // Predicated region
      $region9: #{tpu_custom_call.1} parent=5 // pred_check
        _
      $region10: #{tpu_custom_call.1} parent=5 // pred_check_branch
        %174 = sbr.rel (%p171) target = $region12
      $region11: #{tpu_custom_call.1} parent=5 // pred_region
        %s175 = ssub.s32 %s20, 1
        // Predicated region
        $region13: #{tpu_custom_call.1} parent=11 // pred_check
          %p176 = pneg %p86
        $region14: #{tpu_custom_call.1} parent=11 // pred_check_branch
          %178 = sbr.rel (%p176) target = $region16
        $region15: #{tpu_custom_call.1} parent=11 // pred_region
          %180 = vsyncadd [#allocation10], 0
          %s181 = sshll.u32 %s1, 4
          %s182 = int_to_ptr.hbm [resolvable:$true] %s181
          %s183 = sshll.u32 [#allocation9], 4
          %s184 = int_to_ptr.vmem [resolvable:$true] %s183
          %189 = dma.hbm_to_vmem [thread:$0]  %s182, 4096, %s184, [#allocation10], 128, 128, 8
        $region16: #{tpu_custom_call.1} parent=11 // pred_fallthru
          _
        // Predicated region
        $region17: #{tpu_custom_call.1} parent=11 // pred_check
          %p190 = pneg %p107
        $region18: #{tpu_custom_call.1} parent=11 // pred_check_branch
          %192 = sbr.rel (%p190) target = $region20
        $region19: #{tpu_custom_call.1} parent=11 // pred_region
          %194 = vsyncadd [#allocation10], 0
          %s195 = sshll.u32 %s2, 4
          %s196 = int_to_ptr.hbm [resolvable:$true] %s195
          %s197 = sshll.u32 [#allocation11], 4
          %s198 = int_to_ptr.vmem [resolvable:$true] %s197
          %203 = dma.hbm_to_vmem [thread:$0]  %s196, 4096, %s198, [#allocation10], 128, 128, 8
        $region20: #{tpu_custom_call.1} parent=11 // pred_fallthru
          _
      $region12: #{tpu_custom_call.1} parent=5 // pred_fallthru
        _
      %p204 = scmp.lt.s32.totalorder %s20, 8
      // Predicated region
      $region21: #{tpu_custom_call.1} parent=5 // pred_check
        %p205 = pneg %p204
      $region22: #{tpu_custom_call.1} parent=5 // pred_check_branch
        %207 = sbr.rel (%p205) target = $region24
      $region23: #{tpu_custom_call.1} parent=5 // pred_region
        // Predicated region
        $region25: #{tpu_custom_call.1} parent=23 // pred_check
          %p208 = pneg %p59
        $region26: #{tpu_custom_call.1} parent=23 // pred_check_branch
          %210 = sbr.rel (%p208) target = $region28
        $region27: #{tpu_custom_call.1} parent=23 // pred_region
          %s211 = sand.u32 %s49, 1
          %s212 = scalar_lea.sflag [#allocation7], %s211
          %s213 = sand.u32 %s49, 1
          %s214 = smul.addr %s213, 512
          %s215 = scalar_lea.vmem [#allocation6], %s214
          %217 = vsyncadd %s212, 0
          %s218 = smul.addr %s27, 64
          %s219 = smul.addr %s218, 8
          %s220 = scalar_lea.hbm %s0, %s219
          %s221 = sshll.u32 %s220, 4
          %s222 = int_to_ptr.hbm [resolvable:$true] %s221
          %s223 = sshll.u32 %s215, 4
          %s224 = int_to_ptr.vmem [resolvable:$true] %s223
          %229 = dma.hbm_to_vmem [thread:$0]  %s222, 8192, %s224, %s212, 256, 256, 16
        $region28: #{tpu_custom_call.1} parent=23 // pred_fallthru
          _
        // Predicated region
        $region29: #{tpu_custom_call.1} parent=23 // pred_check
          %p230 = pneg %p127
        $region30: #{tpu_custom_call.1} parent=23 // pred_check_branch
          %232 = sbr.rel (%p230) target = $region32
        $region31: #{tpu_custom_call.1} parent=23 // pred_region
          %s233 = sand.u32 %s117, 1
          %s234 = scalar_lea.sflag [#allocation13], %s233
          %s235 = sand.u32 %s117, 1
          %s236 = smul.addr %s235, 128
          %s237 = scalar_lea.vmem [#allocation12], %s236
          %s238 = smul.u32 16, %s29
          %240 = vsyncadd %s234, 0
          %s241 = smul.addr %s238, 2
          %s242 = smul.addr %s241, 4
          %s243 = scalar_lea.hbm %s3, %s242
          %s244 = sshll.u32 %s243, 4
          %s245 = int_to_ptr.hbm [resolvable:$true] %s244
          %s246 = sshll.u32 %s237, 4
          %s247 = int_to_ptr.vmem [resolvable:$true] %s246
          %252 = dma.hbm_to_vmem [thread:$0]  %s245, 2048, %s247, %s234, 128, 128, 8
        $region32: #{tpu_custom_call.1} parent=23 // pred_fallthru
          _
      $region24: #{tpu_custom_call.1} parent=5 // pred_fallthru
        _
      %p253 = scmp.le.s32.totalorder 1, %s20
      %p254 = scmp.lt.s32.totalorder %s20, 9
      %p255 = pnand %p253, %p254
      %p256 = pneg %p255
      // Predicated region
      $region33: #{tpu_custom_call.1} parent=5 // pred_check
        _
      $region34: #{tpu_custom_call.1} parent=5 // pred_check_branch
        %258 = sbr.rel (%p255) target = $region36
      $region35: #{tpu_custom_call.1} parent=5 // pred_region
        %s259 = ssub.s32 %s20, 1
        %s260 = sand.u32 %s52, 1
        %s261 = scalar_lea.sflag [#allocation7], %s260
        %s262 = sand.u32 %s52, 1
        %s263 = smul.addr %s262, 512
        %s264 = scalar_lea.vmem [#allocation6], %s263
        // Predicated region
        $region37: #{tpu_custom_call.1} parent=35 // pred_check
          %p265 = pneg %p65
        $region38: #{tpu_custom_call.1} parent=35 // pred_check_branch
          %267 = sbr.rel (%p265) target = $region40
        $region39: #{tpu_custom_call.1} parent=35 // pred_region
          %269 = dma.done %s261, 8192
        $region40: #{tpu_custom_call.1} parent=35 // pred_fallthru
          _
        // Predicated region
        $region41: #{tpu_custom_call.1} parent=35 // pred_check
          %p270 = pneg %p86
        $region42: #{tpu_custom_call.1} parent=35 // pred_check_branch
          %272 = sbr.rel (%p270) target = $region44
        $region43: #{tpu_custom_call.1} parent=35 // pred_region
          %274 = dma.done [#allocation10], 4096
        $region44: #{tpu_custom_call.1} parent=35 // pred_fallthru
          _
        // Predicated region
        $region45: #{tpu_custom_call.1} parent=35 // pred_check
          %p275 = pneg %p107
        $region46: #{tpu_custom_call.1} parent=35 // pred_check_branch
          %277 = sbr.rel (%p275) target = $region48
        $region47: #{tpu_custom_call.1} parent=35 // pred_region
          %279 = dma.done [#allocation10], 4096
        $region48: #{tpu_custom_call.1} parent=35 // pred_fallthru
          _
        %s280 = sand.u32 %s120, 1
        %s281 = scalar_lea.sflag [#allocation13], %s280
        %s282 = sand.u32 %s120, 1
        %s283 = smul.addr %s282, 128
        %s284 = scalar_lea.vmem [#allocation12], %s283
        // Predicated region
        $region49: #{tpu_custom_call.1} parent=35 // pred_check
          %p285 = pneg %p133
        $region50: #{tpu_custom_call.1} parent=35 // pred_check_branch
          %287 = sbr.rel (%p285) target = $region52
        $region51: #{tpu_custom_call.1} parent=35 // pred_region
          %289 = dma.done %s281, 2048
        $region52: #{tpu_custom_call.1} parent=35 // pred_fallthru
          _
        %s290 = sand.u32 %s52, 1
        %s291 = scalar_lea.sflag [#allocation7], %s290
        %s292 = sand.u32 %s52, 1
        %s293 = smul.addr %s292, 512
        %s294 = scalar_lea.vmem [#allocation6], %s293
        %p295 = pneg %p65
        %p296 = pneg %p62
        %p297 = pneg %p86
        %p298 = pneg %p83
        %p299 = pneg %p107
        %p300 = pneg %p104
        %s301 = sand.u32 %s120, 1
        %s302 = scalar_lea.sflag [#allocation13], %s301
        %s303 = sand.u32 %s120, 1
        %s304 = smul.addr %s303, 128
        %s305 = scalar_lea.vmem [#allocation12], %s304
        %p306 = pneg %p133
        %p307 = pneg %p130
        %p308 = pneg %p161
        %p309 = pneg %p158
        %s310 = sand.u32 %s148, 1
        %s311 = scalar_lea.sflag [#allocation8], %s310
        %s312 = sand.u32 %s148, 1
        %s313 = smul.addr %s312, 256
        %s314 = scalar_lea.vmem [#allocation14], %s313
        %s315 = smul.u32 16, %s32
        %s316 = smul.u32 16, %s31
        %p317 = scmp.eq.s32.totalorder %s32, 0
        // Predicated region
        $region53: #{tpu_custom_call.1} parent=35 // pred_check
          %p318 = pneg %p317
        $region54: #{tpu_custom_call.1} parent=35 // pred_check_branch
          %320 = sbr.rel (%p318) target = $region56
        $region55: #{tpu_custom_call.1} parent=35 // pred_region
          %s321 = smul.u32 %s31, 128
          %s322 = sshra.s32 %s321, 3
          %s323 = sand.u32 %s321, 7
          %s324 = smul.u32 %s322, 2
          %s325 = smul.addr %s324, 8
          %s326 = scalar_lea.vmem %s264, %s325 [#allocation6]
          %v327 = vld [vmem:[%s326] sm:$0xff]
          %v328 = vld [vmem:[%s326 + $0x8] sm:$0xff]
          %v329 = vld [vmem:[%s326 + $0x10] sm:$0xff]
          %v330 = vld [vmem:[%s326 + $0x18] sm:$0xff]
          %v331 = vld [vmem:[%s326 + $0x20] sm:$0xff]
          %v332 = vld [vmem:[%s326 + $0x28] sm:$0xff]
          %v333 = vld [vmem:[%s326 + $0x30] sm:$0xff]
          %v334 = vld [vmem:[%s326 + $0x38] sm:$0xff]
          %v335 = vld [vmem:[%s326 + $0x40] sm:$0xff]
          %v336 = vld [vmem:[%s326 + $0x48] sm:$0xff]
          %v337 = vld [vmem:[%s326 + $0x50] sm:$0xff]
          %v338 = vld [vmem:[%s326 + $0x58] sm:$0xff]
          %v339 = vld [vmem:[%s326 + $0x60] sm:$0xff]
          %v340 = vld [vmem:[%s326 + $0x68] sm:$0xff]
          %v341 = vld [vmem:[%s326 + $0x70] sm:$0xff]
          %v342 = vld [vmem:[%s326 + $0x78] sm:$0xff]
          %v343 = vld [vmem:[%s326 + $0x80] sm:$0xff]
          %v344 = vld [vmem:[%s326 + $0x88] sm:$0xff]
          %v345 = vld [vmem:[%s326 + $0x90] sm:$0xff]
          %v346 = vld [vmem:[%s326 + $0x98] sm:$0xff]
          %v347 = vld [vmem:[%s326 + $0xa0] sm:$0xff]
          %v348 = vld [vmem:[%s326 + $0xa8] sm:$0xff]
          %v349 = vld [vmem:[%s326 + $0xb0] sm:$0xff]
          %v350 = vld [vmem:[%s326 + $0xb8] sm:$0xff]
          %v351 = vld [vmem:[%s326 + $0xc0] sm:$0xff]
          %v352 = vld [vmem:[%s326 + $0xc8] sm:$0xff]
          %v353 = vld [vmem:[%s326 + $0xd0] sm:$0xff]
          %v354 = vld [vmem:[%s326 + $0xd8] sm:$0xff]
          %v355 = vld [vmem:[%s326 + $0xe0] sm:$0xff]
          %v356 = vld [vmem:[%s326 + $0xe8] sm:$0xff]
          %v357 = vld [vmem:[%s326 + $0xf0] sm:$0xff]
          %v358 = vld [vmem:[%s326 + $0xf8] sm:$0xff]
          %v359 = vpack.c.bf16 %v329, %v327
          %v360 = vpack.c.bf16 %v330, %v328
          %v361 = vpack.c.bf16 %v333, %v331
          %v362 = vpack.c.bf16 %v334, %v332
          %v363 = vpack.c.bf16 %v337, %v335
          %v364 = vpack.c.bf16 %v338, %v336
          %v365 = vpack.c.bf16 %v341, %v339
          %v366 = vpack.c.bf16 %v342, %v340
          %v367 = vpack.c.bf16 %v345, %v343
          %v368 = vpack.c.bf16 %v346, %v344
          %v369 = vpack.c.bf16 %v349, %v347
          %v370 = vpack.c.bf16 %v350, %v348
          %v371 = vpack.c.bf16 %v353, %v351
          %v372 = vpack.c.bf16 %v354, %v352
          %v373 = vpack.c.bf16 %v357, %v355
          %v374 = vpack.c.bf16 %v358, %v356
          %v375 = vld [vmem:[#allocation9] sm:$0xff]
          %v376 = vld [vmem:[#allocation9 + $0x8] sm:$0xff]
          %v377 = vld [vmem:[#allocation9 + $0x10] sm:$0xff]
          %v378 = vld [vmem:[#allocation9 + $0x18] sm:$0xff]
          %v379 = vld [vmem:[#allocation9 + $0x20] sm:$0xff]
          %v380 = vld [vmem:[#allocation9 + $0x28] sm:$0xff]
          %v381 = vld [vmem:[#allocation9 + $0x30] sm:$0xff]
          %v382 = vld [vmem:[#allocation9 + $0x38] sm:$0xff]
          %v383 = vld [vmem:[#allocation9 + $0x40] sm:$0xff]
          %v384 = vld [vmem:[#allocation9 + $0x48] sm:$0xff]
          %v385 = vld [vmem:[#allocation9 + $0x50] sm:$0xff]
          %v386 = vld [vmem:[#allocation9 + $0x58] sm:$0xff]
          %v387 = vld [vmem:[#allocation9 + $0x60] sm:$0xff]
          %v388 = vld [vmem:[#allocation9 + $0x68] sm:$0xff]
          %v389 = vld [vmem:[#allocation9 + $0x70] sm:$0xff]
          %v390 = vld [vmem:[#allocation9 + $0x78] sm:$0xff]
          %v391 = vld [vmem:[#allocation9 + $0x80] sm:$0xff]
          %v392 = vld [vmem:[#allocation9 + $0x88] sm:$0xff]
          %v393 = vld [vmem:[#allocation9 + $0x90] sm:$0xff]
          %v394 = vld [vmem:[#allocation9 + $0x98] sm:$0xff]
          %v395 = vld [vmem:[#allocation9 + $0xa0] sm:$0xff]
          %v396 = vld [vmem:[#allocation9 + $0xa8] sm:$0xff]
          %v397 = vld [vmem:[#allocation9 + $0xb0] sm:$0xff]
          %v398 = vld [vmem:[#allocation9 + $0xb8] sm:$0xff]
          %v399 = vld [vmem:[#allocation9 + $0xc0] sm:$0xff]
          %v400 = vld [vmem:[#allocation9 + $0xc8] sm:$0xff]
          %v401 = vld [vmem:[#allocation9 + $0xd0] sm:$0xff]
          %v402 = vld [vmem:[#allocation9 + $0xd8] sm:$0xff]
          %v403 = vld [vmem:[#allocation9 + $0xe0] sm:$0xff]
          %v404 = vld [vmem:[#allocation9 + $0xe8] sm:$0xff]
          %v405 = vld [vmem:[#allocation9 + $0xf0] sm:$0xff]
          %v406 = vld [vmem:[#allocation9 + $0xf8] sm:$0xff]
          %v439 = vunpack.c.l.b16 %v375
          %v440 = vunpack.c.h.b16 %v375
          %v441 = vunpack.c.l.b16 %v376
          %v442 = vunpack.c.h.b16 %v376
          %v443 = vunpack.c.l.b16 %v377
          %v444 = vunpack.c.h.b16 %v377
          %v445 = vunpack.c.l.b16 %v378
          %v446 = vunpack.c.h.b16 %v378
          %v447 = vunpack.c.l.b16 %v379
          %v448 = vunpack.c.h.b16 %v379
          %v449 = vunpack.c.l.b16 %v380
          %v450 = vunpack.c.h.b16 %v380
          %v451 = vunpack.c.l.b16 %v381
          %v452 = vunpack.c.h.b16 %v381
          %v453 = vunpack.c.l.b16 %v382
          %v454 = vunpack.c.h.b16 %v382
          %v455 = vunpack.c.l.b16 %v383
          %v456 = vunpack.c.h.b16 %v383
          %v457 = vunpack.c.l.b16 %v384
          %v458 = vunpack.c.h.b16 %v384
          %v459 = vunpack.c.l.b16 %v385
          %v460 = vunpack.c.h.b16 %v385
          %v461 = vunpack.c.l.b16 %v386
          %v462 = vunpack.c.h.b16 %v386
          %v463 = vunpack.c.l.b16 %v387
          %v464 = vunpack.c.h.b16 %v387
          %v465 = vunpack.c.l.b16 %v388
          %v466 = vunpack.c.h.b16 %v388
          %v467 = vunpack.c.l.b16 %v389
          %v468 = vunpack.c.h.b16 %v389
          %v469 = vunpack.c.l.b16 %v390
          %v470 = vunpack.c.h.b16 %v390
          %v471 = vunpack.c.l.b16 %v391
          %v472 = vunpack.c.h.b16 %v391
          %v473 = vunpack.c.l.b16 %v392
          %v474 = vunpack.c.h.b16 %v392
          %v475 = vunpack.c.l.b16 %v393
          %v476 = vunpack.c.h.b16 %v393
          %v477 = vunpack.c.l.b16 %v394
          %v478 = vunpack.c.h.b16 %v394
          %v479 = vunpack.c.l.b16 %v395
          %v480 = vunpack.c.h.b16 %v395
          %v481 = vunpack.c.l.b16 %v396
          %v482 = vunpack.c.h.b16 %v396
          %v483 = vunpack.c.l.b16 %v397
          %v484 = vunpack.c.h.b16 %v397
          %v485 = vunpack.c.l.b16 %v398
          %v486 = vunpack.c.h.b16 %v398
          %v487 = vunpack.c.l.b16 %v399
          %v488 = vunpack.c.h.b16 %v399
          %v489 = vunpack.c.l.b16 %v400
          %v490 = vunpack.c.h.b16 %v400
          %v491 = vunpack.c.l.b16 %v401
          %v492 = vunpack.c.h.b16 %v401
          %v493 = vunpack.c.l.b16 %v402
          %v494 = vunpack.c.h.b16 %v402
          %v495 = vunpack.c.l.b16 %v403
          %v496 = vunpack.c.h.b16 %v403
          %v497 = vunpack.c.l.b16 %v404
          %v498 = vunpack.c.h.b16 %v404
          %v499 = vunpack.c.l.b16 %v405
          %v500 = vunpack.c.h.b16 %v405
          %v501 = vunpack.c.l.b16 %v406
          %v502 = vunpack.c.h.b16 %v406
          %v503 = vpack.c.b16 %v441, %v439
          %v504 = vpack.c.b16 %v442, %v440
          %v505 = vpack.c.b16 %v445, %v443
          %v506 = vpack.c.b16 %v446, %v444
          %v507 = vpack.c.b16 %v449, %v447
          %v508 = vpack.c.b16 %v450, %v448
          %v509 = vpack.c.b16 %v453, %v451
          %v510 = vpack.c.b16 %v454, %v452
          %v511 = vpack.c.b16 %v457, %v455
          %v512 = vpack.c.b16 %v458, %v456
          %v513 = vpack.c.b16 %v461, %v459
          %v514 = vpack.c.b16 %v462, %v460
          %v515 = vpack.c.b16 %v465, %v463
          %v516 = vpack.c.b16 %v466, %v464
          %v517 = vpack.c.b16 %v469, %v467
          %v518 = vpack.c.b16 %v470, %v468
          %v519 = vpack.c.b16 %v473, %v471
          %v520 = vpack.c.b16 %v474, %v472
          %v521 = vpack.c.b16 %v477, %v475
          %v522 = vpack.c.b16 %v478, %v476
          %v523 = vpack.c.b16 %v481, %v479
          %v524 = vpack.c.b16 %v482, %v480
          %v525 = vpack.c.b16 %v485, %v483
          %v526 = vpack.c.b16 %v486, %v484
          %v527 = vpack.c.b16 %v489, %v487
          %v528 = vpack.c.b16 %v490, %v488
          %v529 = vpack.c.b16 %v493, %v491
          %v530 = vpack.c.b16 %v494, %v492
          %v531 = vpack.c.b16 %v497, %v495
          %v532 = vpack.c.b16 %v498, %v496
          %v533 = vpack.c.b16 %v501, %v499
          %v534 = vpack.c.b16 %v502, %v500
          %567 = vmatpush.bf16.xpose.msra.mxu0 %v517
          %568 = vmatpush.bf16.xpose.msra.mxu0 %v515
          %569 = vmatpush.bf16.xpose.msra.mxu0 %v513
          %570 = vmatpush.bf16.xpose.msra.mxu0 %v511
          %571 = vmatpush.bf16.xpose.msra.mxu0 %v509
          %572 = vmatpush.bf16.xpose.msra.mxu0 %v507
          %573 = vmatpush.bf16.xpose.msra.mxu0 %v505
          %574 = vmatpush.bf16.xpose.msra.mxu0 %v503
          %575 = vmatmul.bf16.gmra.mxu0 %v359
          %v576 = vpop.f32.mrf.mxu0
          %v577 = vadd.f32 0.0, %v576
          %v578 = vpop.f32.mrf.mxu0
          %v579 = vadd.f32 0.0, %v578
          %580 = vmatmul.bf16.gmra.mxu0 %v361
          %v581 = vpop.f32.mrf.mxu0
          %v582 = vadd.f32 0.0, %v581
          %v583 = vpop.f32.mrf.mxu0
          %v584 = vadd.f32 0.0, %v583
          %585 = vmatmul.bf16.gmra.mxu0 %v363
          %v586 = vpop.f32.mrf.mxu0
          %v587 = vadd.f32 0.0, %v586
          %v588 = vpop.f32.mrf.mxu0
          %v589 = vadd.f32 0.0, %v588
          %590 = vmatmul.bf16.gmra.mxu0 %v365
          %v591 = vpop.f32.mrf.mxu0
          %v592 = vadd.f32 0.0, %v591
          %v593 = vpop.f32.mrf.mxu0
          %v594 = vadd.f32 0.0, %v593
          %595 = vmatmul.bf16.gmra.mxu0 %v367
          %v596 = vpop.f32.mrf.mxu0
          %v597 = vadd.f32 0.0, %v596
          %v598 = vpop.f32.mrf.mxu0
          %v599 = vadd.f32 0.0, %v598
          %600 = vmatmul.bf16.gmra.mxu0 %v369
          %v601 = vpop.f32.mrf.mxu0
          %v602 = vadd.f32 0.0, %v601
          %v603 = vpop.f32.mrf.mxu0
          %v604 = vadd.f32 0.0, %v603
          %605 = vmatmul.bf16.gmra.mxu0 %v371
          %v606 = vpop.f32.mrf.mxu0
          %v607 = vadd.f32 0.0, %v606
          %v608 = vpop.f32.mrf.mxu0
          %v609 = vadd.f32 0.0, %v608
          %610 = vmatmul.bf16.gmra.mxu0 %v373
          %v611 = vpop.f32.mrf.mxu0
          %v612 = vadd.f32 0.0, %v611
          %v613 = vpop.f32.mrf.mxu0
          %v614 = vadd.f32 0.0, %v613
          %615 = vdwg.mxu0
          %616 = vmatpush.bf16.xpose.msra.mxu0 %v518
          %617 = vmatpush.bf16.xpose.msra.mxu0 %v516
          %618 = vmatpush.bf16.xpose.msra.mxu0 %v514
          %619 = vmatpush.bf16.xpose.msra.mxu0 %v512
          %620 = vmatpush.bf16.xpose.msra.mxu0 %v510
          %621 = vmatpush.bf16.xpose.msra.mxu0 %v508
          %622 = vmatpush.bf16.xpose.msra.mxu0 %v506
          %623 = vmatpush.bf16.xpose.msra.mxu0 %v504
          %624 = vmatmul.bf16.gmra.mxu0 %v360
          %v625 = vpop.f32.mrf.mxu0
          %v626 = vadd.f32 %v577, %v625
          %v627 = vpop.f32.mrf.mxu0
          %v628 = vadd.f32 %v579, %v627
          %629 = vmatmul.bf16.gmra.mxu0 %v362
          %v630 = vpop.f32.mrf.mxu0
          %v631 = vadd.f32 %v582, %v630
          %v632 = vpop.f32.mrf.mxu0
          %v633 = vadd.f32 %v584, %v632
          %634 = vmatmul.bf16.gmra.mxu0 %v364
          %v635 = vpop.f32.mrf.mxu0
          %v636 = vadd.f32 %v587, %v635
          %v637 = vpop.f32.mrf.mxu0
          %v638 = vadd.f32 %v589, %v637
          %639 = vmatmul.bf16.gmra.mxu0 %v366
          %v640 = vpop.f32.mrf.mxu0
          %v641 = vadd.f32 %v592, %v640
          %v642 = vpop.f32.mrf.mxu0
          %v643 = vadd.f32 %v594, %v642
          %644 = vmatmul.bf16.gmra.mxu0 %v368
          %v645 = vpop.f32.mrf.mxu0
          %v646 = vadd.f32 %v597, %v645
          %v647 = vpop.f32.mrf.mxu0
          %v648 = vadd.f32 %v599, %v647
          %649 = vmatmul.bf16.gmra.mxu0 %v370
          %v650 = vpop.f32.mrf.mxu0
          %v651 = vadd.f32 %v602, %v650
          %v652 = vpop.f32.mrf.mxu0
          %v653 = vadd.f32 %v604, %v652
          %654 = vmatmul.bf16.gmra.mxu0 %v372
          %v655 = vpop.f32.mrf.mxu0
          %v656 = vadd.f32 %v607, %v655
          %v657 = vpop.f32.mrf.mxu0
          %v658 = vadd.f32 %v609, %v657
          %659 = vmatmul.bf16.gmra.mxu0 %v374
          %v660 = vpop.f32.mrf.mxu0
          %v661 = vadd.f32 %v612, %v660
          %v662 = vpop.f32.mrf.mxu0
          %v663 = vadd.f32 %v614, %v662
          %664 = vdwg.mxu0
          %665 = vmatpush.bf16.xpose.msra.mxu0 %v533
          %666 = vmatpush.bf16.xpose.msra.mxu0 %v531
          %667 = vmatpush.bf16.xpose.msra.mxu0 %v529
          %668 = vmatpush.bf16.xpose.msra.mxu0 %v527
          %669 = vmatpush.bf16.xpose.msra.mxu0 %v525
          %670 = vmatpush.bf16.xpose.msra.mxu0 %v523
          %671 = vmatpush.bf16.xpose.msra.mxu0 %v521
          %672 = vmatpush.bf16.xpose.msra.mxu0 %v519
          %673 = vmatmul.bf16.gmra.mxu0 %v359
          %v674 = vpop.f32.mrf.mxu0
          %v675 = vadd.f32 0.0, %v674
          %v676 = vpop.f32.mrf.mxu0
          %v677 = vadd.f32 0.0, %v676
          %678 = vmatmul.bf16.gmra.mxu0 %v361
          %v679 = vpop.f32.mrf.mxu0
          %v680 = vadd.f32 0.0, %v679
          %v681 = vpop.f32.mrf.mxu0
          %v682 = vadd.f32 0.0, %v681
          %683 = vmatmul.bf16.gmra.mxu0 %v363
          %v684 = vpop.f32.mrf.mxu0
          %v685 = vadd.f32 0.0, %v684
          %v686 = vpop.f32.mrf.mxu0
          %v687 = vadd.f32 0.0, %v686
          %688 = vmatmul.bf16.gmra.mxu0 %v365
          %v689 = vpop.f32.mrf.mxu0
          %v690 = vadd.f32 0.0, %v689
          %v691 = vpop.f32.mrf.mxu0
          %v692 = vadd.f32 0.0, %v691
          %693 = vmatmul.bf16.gmra.mxu0 %v367
          %v694 = vpop.f32.mrf.mxu0
          %v695 = vadd.f32 0.0, %v694
          %v696 = vpop.f32.mrf.mxu0
          %v697 = vadd.f32 0.0, %v696
          %698 = vmatmul.bf16.gmra.mxu0 %v369
          %v699 = vpop.f32.mrf.mxu0
          %v700 = vadd.f32 0.0, %v699
          %v701 = vpop.f32.mrf.mxu0
          %v702 = vadd.f32 0.0, %v701
          %703 = vmatmul.bf16.gmra.mxu0 %v371
          %v704 = vpop.f32.mrf.mxu0
          %v705 = vadd.f32 0.0, %v704
          %v706 = vpop.f32.mrf.mxu0
          %v707 = vadd.f32 0.0, %v706
          %708 = vmatmul.bf16.gmra.mxu0 %v373
          %v709 = vpop.f32.mrf.mxu0
          %v710 = vadd.f32 0.0, %v709
          %v711 = vpop.f32.mrf.mxu0
          %v712 = vadd.f32 0.0, %v711
          %713 = vdwg.mxu0
          %714 = vmatpush.bf16.xpose.msra.mxu0 %v534
          %715 = vmatpush.bf16.xpose.msra.mxu0 %v532
          %716 = vmatpush.bf16.xpose.msra.mxu0 %v530
          %717 = vmatpush.bf16.xpose.msra.mxu0 %v528
          %718 = vmatpush.bf16.xpose.msra.mxu0 %v526
          %719 = vmatpush.bf16.xpose.msra.mxu0 %v524
          %720 = vmatpush.bf16.xpose.msra.mxu0 %v522
          %721 = vmatpush.bf16.xpose.msra.mxu0 %v520
          %722 = vmatmul.bf16.gmra.mxu0 %v360
          %v723 = vpop.f32.mrf.mxu0
          %v724 = vadd.f32 %v675, %v723
          %v725 = vpop.f32.mrf.mxu0
          %v726 = vadd.f32 %v677, %v725
          %727 = vmatmul.bf16.gmra.mxu0 %v362
          %v728 = vpop.f32.mrf.mxu0
          %v729 = vadd.f32 %v680, %v728
          %v730 = vpop.f32.mrf.mxu0
          %v731 = vadd.f32 %v682, %v730
          %732 = vmatmul.bf16.gmra.mxu0 %v364
          %v733 = vpop.f32.mrf.mxu0
          %v734 = vadd.f32 %v685, %v733
          %v735 = vpop.f32.mrf.mxu0
          %v736 = vadd.f32 %v687, %v735
          %737 = vmatmul.bf16.gmra.mxu0 %v366
          %v738 = vpop.f32.mrf.mxu0
          %v739 = vadd.f32 %v690, %v738
          %v740 = vpop.f32.mrf.mxu0
          %v741 = vadd.f32 %v692, %v740
          %742 = vmatmul.bf16.gmra.mxu0 %v368
          %v743 = vpop.f32.mrf.mxu0
          %v744 = vadd.f32 %v695, %v743
          %v745 = vpop.f32.mrf.mxu0
          %v746 = vadd.f32 %v697, %v745
          %747 = vmatmul.bf16.gmra.mxu0 %v370
          %v748 = vpop.f32.mrf.mxu0
          %v749 = vadd.f32 %v700, %v748
          %v750 = vpop.f32.mrf.mxu0
          %v751 = vadd.f32 %v702, %v750
          %752 = vmatmul.bf16.gmra.mxu0 %v372
          %v753 = vpop.f32.mrf.mxu0
          %v754 = vadd.f32 %v705, %v753
          %v755 = vpop.f32.mrf.mxu0
          %v756 = vadd.f32 %v707, %v755
          %757 = vmatmul.bf16.gmra.mxu0 %v374
          %v758 = vpop.f32.mrf.mxu0
          %v759 = vadd.f32 %v710, %v758
          %v760 = vpop.f32.mrf.mxu0
          %v761 = vadd.f32 %v712, %v760
          %762 = vdwg.mxu0
          %v763 = vpack.c.bf16 %v724, %v626
          %v764 = vpack.c.bf16 %v726, %v628
          %v765 = vpack.c.bf16 %v729, %v631
          %v766 = vpack.c.bf16 %v731, %v633
          %v767 = vpack.c.bf16 %v734, %v636
          %v768 = vpack.c.bf16 %v736, %v638
          %v769 = vpack.c.bf16 %v739, %v641
          %v770 = vpack.c.bf16 %v741, %v643
          %v771 = vpack.c.bf16 %v744, %v646
          %v772 = vpack.c.bf16 %v746, %v648
          %v773 = vpack.c.bf16 %v749, %v651
          %v774 = vpack.c.bf16 %v751, %v653
          %v775 = vpack.c.bf16 %v754, %v656
          %v776 = vpack.c.bf16 %v756, %v658
          %v777 = vpack.c.bf16 %v759, %v661
          %v778 = vpack.c.bf16 %v761, %v663
          %779 = vst [vmem:[#allocation2] sm:$0xff] %v763
          %780 = vst [vmem:[#allocation2 + $0x8] sm:$0xff] %v764
          %781 = vst [vmem:[#allocation2 + $0x10] sm:$0xff] %v765
          %782 = vst [vmem:[#allocation2 + $0x18] sm:$0xff] %v766
          %783 = vst [vmem:[#allocation2 + $0x20] sm:$0xff] %v767
          %784 = vst [vmem:[#allocation2 + $0x28] sm:$0xff] %v768
          %785 = vst [vmem:[#allocation2 + $0x30] sm:$0xff] %v769
          %786 = vst [vmem:[#allocation2 + $0x38] sm:$0xff] %v770
          %787 = vst [vmem:[#allocation2 + $0x40] sm:$0xff] %v771
          %788 = vst [vmem:[#allocation2 + $0x48] sm:$0xff] %v772
          %789 = vst [vmem:[#allocation2 + $0x50] sm:$0xff] %v773
          %790 = vst [vmem:[#allocation2 + $0x58] sm:$0xff] %v774
          %791 = vst [vmem:[#allocation2 + $0x60] sm:$0xff] %v775
          %792 = vst [vmem:[#allocation2 + $0x68] sm:$0xff] %v776
          %793 = vst [vmem:[#allocation2 + $0x70] sm:$0xff] %v777
          %794 = vst [vmem:[#allocation2 + $0x78] sm:$0xff] %v778
          %vm795 = vcmask 7168
          %796 = vst.msk [vmem:[#allocation3] sm:$0xff] %vm795, -inf
          %797 = vst.msk [vmem:[#allocation3 + $0x8] sm:$0xff] %vm795, -inf
          %798 = vst.msk [vmem:[#allocation3 + $0x10] sm:$0xff] %vm795, -inf
          %799 = vst.msk [vmem:[#allocation3 + $0x18] sm:$0xff] %vm795, -inf
          %800 = vst.msk [vmem:[#allocation3 + $0x20] sm:$0xff] %vm795, -inf
          %801 = vst.msk [vmem:[#allocation3 + $0x28] sm:$0xff] %vm795, -inf
          %802 = vst.msk [vmem:[#allocation3 + $0x30] sm:$0xff] %vm795, -inf
          %803 = vst.msk [vmem:[#allocation3 + $0x38] sm:$0xff] %vm795, -inf
          %804 = vst.msk [vmem:[#allocation3 + $0x40] sm:$0xff] %vm795, -inf
          %805 = vst.msk [vmem:[#allocation3 + $0x48] sm:$0xff] %vm795, -inf
          %806 = vst.msk [vmem:[#allocation3 + $0x50] sm:$0xff] %vm795, -inf
          %807 = vst.msk [vmem:[#allocation3 + $0x58] sm:$0xff] %vm795, -inf
          %808 = vst.msk [vmem:[#allocation3 + $0x60] sm:$0xff] %vm795, -inf
          %809 = vst.msk [vmem:[#allocation3 + $0x68] sm:$0xff] %vm795, -inf
          %810 = vst.msk [vmem:[#allocation3 + $0x70] sm:$0xff] %vm795, -inf
          %811 = vst.msk [vmem:[#allocation3 + $0x78] sm:$0xff] %vm795, -inf
          %812 = vst.msk [vmem:[#allocation4] sm:$0xff] %vm795, 0.0
          %813 = vst.msk [vmem:[#allocation4 + $0x8] sm:$0xff] %vm795, 0.0
          %814 = vst.msk [vmem:[#allocation4 + $0x10] sm:$0xff] %vm795, 0.0
          %815 = vst.msk [vmem:[#allocation4 + $0x18] sm:$0xff] %vm795, 0.0
          %816 = vst.msk [vmem:[#allocation4 + $0x20] sm:$0xff] %vm795, 0.0
          %817 = vst.msk [vmem:[#allocation4 + $0x28] sm:$0xff] %vm795, 0.0
          %818 = vst.msk [vmem:[#allocation4 + $0x30] sm:$0xff] %vm795, 0.0
          %819 = vst.msk [vmem:[#allocation4 + $0x38] sm:$0xff] %vm795, 0.0
          %820 = vst.msk [vmem:[#allocation4 + $0x40] sm:$0xff] %vm795, 0.0
          %821 = vst.msk [vmem:[#allocation4 + $0x48] sm:$0xff] %vm795, 0.0
          %822 = vst.msk [vmem:[#allocation4 + $0x50] sm:$0xff] %vm795, 0.0
          %823 = vst.msk [vmem:[#allocation4 + $0x58] sm:$0xff] %vm795, 0.0
          %824 = vst.msk [vmem:[#allocation4 + $0x60] sm:$0xff] %vm795, 0.0
          %825 = vst.msk [vmem:[#allocation4 + $0x68] sm:$0xff] %vm795, 0.0
          %826 = vst.msk [vmem:[#allocation4 + $0x70] sm:$0xff] %vm795, 0.0
          %827 = vst.msk [vmem:[#allocation4 + $0x78] sm:$0xff] %vm795, 0.0
          %828 = vst [vmem:[#allocation5] sm:$0xff] 0.0
          %829 = vst [vmem:[#allocation5 + $0x8] sm:$0xff] 0.0
          %830 = vst [vmem:[#allocation5 + $0x10] sm:$0xff] 0.0
          %831 = vst [vmem:[#allocation5 + $0x18] sm:$0xff] 0.0
          %832 = vst [vmem:[#allocation5 + $0x20] sm:$0xff] 0.0
          %833 = vst [vmem:[#allocation5 + $0x28] sm:$0xff] 0.0
          %834 = vst [vmem:[#allocation5 + $0x30] sm:$0xff] 0.0
          %835 = vst [vmem:[#allocation5 + $0x38] sm:$0xff] 0.0
          %836 = vst [vmem:[#allocation5 + $0x40] sm:$0xff] 0.0
          %837 = vst [vmem:[#allocation5 + $0x48] sm:$0xff] 0.0
          %838 = vst [vmem:[#allocation5 + $0x50] sm:$0xff] 0.0
          %839 = vst [vmem:[#allocation5 + $0x58] sm:$0xff] 0.0
          %840 = vst [vmem:[#allocation5 + $0x60] sm:$0xff] 0.0
          %841 = vst [vmem:[#allocation5 + $0x68] sm:$0xff] 0.0
          %842 = vst [vmem:[#allocation5 + $0x70] sm:$0xff] 0.0
          %843 = vst [vmem:[#allocation5 + $0x78] sm:$0xff] 0.0
          %844 = vst [vmem:[#allocation5 + $0x80] sm:$0xff] 0.0
          %845 = vst [vmem:[#allocation5 + $0x88] sm:$0xff] 0.0
          %846 = vst [vmem:[#allocation5 + $0x90] sm:$0xff] 0.0
          %847 = vst [vmem:[#allocation5 + $0x98] sm:$0xff] 0.0
          %848 = vst [vmem:[#allocation5 + $0xa0] sm:$0xff] 0.0
          %849 = vst [vmem:[#allocation5 + $0xa8] sm:$0xff] 0.0
          %850 = vst [vmem:[#allocation5 + $0xb0] sm:$0xff] 0.0
          %851 = vst [vmem:[#allocation5 + $0xb8] sm:$0xff] 0.0
          %852 = vst [vmem:[#allocation5 + $0xc0] sm:$0xff] 0.0
          %853 = vst [vmem:[#allocation5 + $0xc8] sm:$0xff] 0.0
          %854 = vst [vmem:[#allocation5 + $0xd0] sm:$0xff] 0.0
          %855 = vst [vmem:[#allocation5 + $0xd8] sm:$0xff] 0.0
          %856 = vst [vmem:[#allocation5 + $0xe0] sm:$0xff] 0.0
          %857 = vst [vmem:[#allocation5 + $0xe8] sm:$0xff] 0.0
          %858 = vst [vmem:[#allocation5 + $0xf0] sm:$0xff] 0.0
          %859 = vst [vmem:[#allocation5 + $0xf8] sm:$0xff] 0.0
        $region56: #{tpu_custom_call.1} parent=35 // pred_fallthru
          _
        %s860 = smul.u32 %s32, 128
        %s861 = sshra.s32 %s860, 3
        %s862 = sand.u32 %s860, 7
        %s863 = smul.u32 %s861, 2
        %s864 = smul.addr %s863, 8
        %s865 = scalar_lea.vmem %s264, %s864 [#allocation6]
        %v866 = vld [vmem:[%s865] sm:$0xff]
        %v867 = vld [vmem:[%s865 + $0x8] sm:$0xff]
        %v868 = vld [vmem:[%s865 + $0x10] sm:$0xff]
        %v869 = vld [vmem:[%s865 + $0x18] sm:$0xff]
        %v870 = vld [vmem:[%s865 + $0x20] sm:$0xff]
        %v871 = vld [vmem:[%s865 + $0x28] sm:$0xff]
        %v872 = vld [vmem:[%s865 + $0x30] sm:$0xff]
        %v873 = vld [vmem:[%s865 + $0x38] sm:$0xff]
        %v874 = vld [vmem:[%s865 + $0x40] sm:$0xff]
        %v875 = vld [vmem:[%s865 + $0x48] sm:$0xff]
        %v876 = vld [vmem:[%s865 + $0x50] sm:$0xff]
        %v877 = vld [vmem:[%s865 + $0x58] sm:$0xff]
        %v878 = vld [vmem:[%s865 + $0x60] sm:$0xff]
        %v879 = vld [vmem:[%s865 + $0x68] sm:$0xff]
        %v880 = vld [vmem:[%s865 + $0x70] sm:$0xff]
        %v881 = vld [vmem:[%s865 + $0x78] sm:$0xff]
        %v882 = vld [vmem:[%s865 + $0x80] sm:$0xff]
        %v883 = vld [vmem:[%s865 + $0x88] sm:$0xff]
        %v884 = vld [vmem:[%s865 + $0x90] sm:$0xff]
        %v885 = vld [vmem:[%s865 + $0x98] sm:$0xff]
        %v886 = vld [vmem:[%s865 + $0xa0] sm:$0xff]
        %v887 = vld [vmem:[%s865 + $0xa8] sm:$0xff]
        %v888 = vld [vmem:[%s865 + $0xb0] sm:$0xff]
        %v889 = vld [vmem:[%s865 + $0xb8] sm:$0xff]
        %v890 = vld [vmem:[%s865 + $0xc0] sm:$0xff]
        %v891 = vld [vmem:[%s865 + $0xc8] sm:$0xff]
        %v892 = vld [vmem:[%s865 + $0xd0] sm:$0xff]
        %v893 = vld [vmem:[%s865 + $0xd8] sm:$0xff]
        %v894 = vld [vmem:[%s865 + $0xe0] sm:$0xff]
        %v895 = vld [vmem:[%s865 + $0xe8] sm:$0xff]
        %v896 = vld [vmem:[%s865 + $0xf0] sm:$0xff]
        %v897 = vld [vmem:[%s865 + $0xf8] sm:$0xff]
        %v898 = vpack.c.bf16 %v868, %v866
        %v899 = vpack.c.bf16 %v869, %v867
        %v900 = vpack.c.bf16 %v872, %v870
        %v901 = vpack.c.bf16 %v873, %v871
        %v902 = vpack.c.bf16 %v876, %v874
        %v903 = vpack.c.bf16 %v877, %v875
        %v904 = vpack.c.bf16 %v880, %v878
        %v905 = vpack.c.bf16 %v881, %v879
        %v906 = vpack.c.bf16 %v884, %v882
        %v907 = vpack.c.bf16 %v885, %v883
        %v908 = vpack.c.bf16 %v888, %v886
        %v909 = vpack.c.bf16 %v889, %v887
        %v910 = vpack.c.bf16 %v892, %v890
        %v911 = vpack.c.bf16 %v893, %v891
        %v912 = vpack.c.bf16 %v896, %v894
        %v913 = vpack.c.bf16 %v897, %v895
        %v914 = vld [vmem:[#allocation11] sm:$0xff]
        %v915 = vld [vmem:[#allocation11 + $0x8] sm:$0xff]
        %v916 = vld [vmem:[#allocation11 + $0x10] sm:$0xff]
        %v917 = vld [vmem:[#allocation11 + $0x18] sm:$0xff]
        %v918 = vld [vmem:[#allocation11 + $0x20] sm:$0xff]
        %v919 = vld [vmem:[#allocation11 + $0x28] sm:$0xff]
        %v920 = vld [vmem:[#allocation11 + $0x30] sm:$0xff]
        %v921 = vld [vmem:[#allocation11 + $0x38] sm:$0xff]
        %v922 = vld [vmem:[#allocation11 + $0x40] sm:$0xff]
        %v923 = vld [vmem:[#allocation11 + $0x48] sm:$0xff]
        %v924 = vld [vmem:[#allocation11 + $0x50] sm:$0xff]
        %v925 = vld [vmem:[#allocation11 + $0x58] sm:$0xff]
        %v926 = vld [vmem:[#allocation11 + $0x60] sm:$0xff]
        %v927 = vld [vmem:[#allocation11 + $0x68] sm:$0xff]
        %v928 = vld [vmem:[#allocation11 + $0x70] sm:$0xff]
        %v929 = vld [vmem:[#allocation11 + $0x78] sm:$0xff]
        %v930 = vld [vmem:[#allocation11 + $0x80] sm:$0xff]
        %v931 = vld [vmem:[#allocation11 + $0x88] sm:$0xff]
        %v932 = vld [vmem:[#allocation11 + $0x90] sm:$0xff]
        %v933 = vld [vmem:[#allocation11 + $0x98] sm:$0xff]
        %v934 = vld [vmem:[#allocation11 + $0xa0] sm:$0xff]
        %v935 = vld [vmem:[#allocation11 + $0xa8] sm:$0xff]
        %v936 = vld [vmem:[#allocation11 + $0xb0] sm:$0xff]
        %v937 = vld [vmem:[#allocation11 + $0xb8] sm:$0xff]
        %v938 = vld [vmem:[#allocation11 + $0xc0] sm:$0xff]
        %v939 = vld [vmem:[#allocation11 + $0xc8] sm:$0xff]
        %v940 = vld [vmem:[#allocation11 + $0xd0] sm:$0xff]
        %v941 = vld [vmem:[#allocation11 + $0xd8] sm:$0xff]
        %v942 = vld [vmem:[#allocation11 + $0xe0] sm:$0xff]
        %v943 = vld [vmem:[#allocation11 + $0xe8] sm:$0xff]
        %v944 = vld [vmem:[#allocation11 + $0xf0] sm:$0xff]
        %v945 = vld [vmem:[#allocation11 + $0xf8] sm:$0xff]
        %v978 = vunpack.c.l.b16 %v914
        %v979 = vunpack.c.h.b16 %v914
        %v980 = vunpack.c.l.b16 %v915
        %v981 = vunpack.c.h.b16 %v915
        %v982 = vunpack.c.l.b16 %v916
        %v983 = vunpack.c.h.b16 %v916
        %v984 = vunpack.c.l.b16 %v917
        %v985 = vunpack.c.h.b16 %v917
        %v986 = vunpack.c.l.b16 %v918
        %v987 = vunpack.c.h.b16 %v918
        %v988 = vunpack.c.l.b16 %v919
        %v989 = vunpack.c.h.b16 %v919
        %v990 = vunpack.c.l.b16 %v920
        %v991 = vunpack.c.h.b16 %v920
        %v992 = vunpack.c.l.b16 %v921
        %v993 = vunpack.c.h.b16 %v921
        %v994 = vunpack.c.l.b16 %v922
        %v995 = vunpack.c.h.b16 %v922
        %v996 = vunpack.c.l.b16 %v923
        %v997 = vunpack.c.h.b16 %v923
        %v998 = vunpack.c.l.b16 %v924
        %v999 = vunpack.c.h.b16 %v924
        %v1000 = vunpack.c.l.b16 %v925
        %v1001 = vunpack.c.h.b16 %v925
        %v1002 = vunpack.c.l.b16 %v926
        %v1003 = vunpack.c.h.b16 %v926
        %v1004 = vunpack.c.l.b16 %v927
        %v1005 = vunpack.c.h.b16 %v927
        %v1006 = vunpack.c.l.b16 %v928
        %v1007 = vunpack.c.h.b16 %v928
        %v1008 = vunpack.c.l.b16 %v929
        %v1009 = vunpack.c.h.b16 %v929
        %v1010 = vunpack.c.l.b16 %v930
        %v1011 = vunpack.c.h.b16 %v930
        %v1012 = vunpack.c.l.b16 %v931
        %v1013 = vunpack.c.h.b16 %v931
        %v1014 = vunpack.c.l.b16 %v932
        %v1015 = vunpack.c.h.b16 %v932
        %v1016 = vunpack.c.l.b16 %v933
        %v1017 = vunpack.c.h.b16 %v933
        %v1018 = vunpack.c.l.b16 %v934
        %v1019 = vunpack.c.h.b16 %v934
        %v1020 = vunpack.c.l.b16 %v935
        %v1021 = vunpack.c.h.b16 %v935
        %v1022 = vunpack.c.l.b16 %v936
        %v1023 = vunpack.c.h.b16 %v936
        %v1024 = vunpack.c.l.b16 %v937
        %v1025 = vunpack.c.h.b16 %v937
        %v1026 = vunpack.c.l.b16 %v938
        %v1027 = vunpack.c.h.b16 %v938
        %v1028 = vunpack.c.l.b16 %v939
        %v1029 = vunpack.c.h.b16 %v939
        %v1030 = vunpack.c.l.b16 %v940
        %v1031 = vunpack.c.h.b16 %v940
        %v1032 = vunpack.c.l.b16 %v941
        %v1033 = vunpack.c.h.b16 %v941
        %v1034 = vunpack.c.l.b16 %v942
        %v1035 = vunpack.c.h.b16 %v942
        %v1036 = vunpack.c.l.b16 %v943
        %v1037 = vunpack.c.h.b16 %v943
        %v1038 = vunpack.c.l.b16 %v944
        %v1039 = vunpack.c.h.b16 %v944
        %v1040 = vunpack.c.l.b16 %v945
        %v1041 = vunpack.c.h.b16 %v945
        %v1042 = vpack.c.b16 %v980, %v978
        %v1043 = vpack.c.b16 %v981, %v979
        %v1044 = vpack.c.b16 %v984, %v982
        %v1045 = vpack.c.b16 %v985, %v983
        %v1046 = vpack.c.b16 %v988, %v986
        %v1047 = vpack.c.b16 %v989, %v987
        %v1048 = vpack.c.b16 %v992, %v990
        %v1049 = vpack.c.b16 %v993, %v991
        %v1050 = vpack.c.b16 %v996, %v994
        %v1051 = vpack.c.b16 %v997, %v995
        %v1052 = vpack.c.b16 %v1000, %v998
        %v1053 = vpack.c.b16 %v1001, %v999
        %v1054 = vpack.c.b16 %v1004, %v1002
        %v1055 = vpack.c.b16 %v1005, %v1003
        %v1056 = vpack.c.b16 %v1008, %v1006
        %v1057 = vpack.c.b16 %v1009, %v1007
        %v1058 = vpack.c.b16 %v1012, %v1010
        %v1059 = vpack.c.b16 %v1013, %v1011
        %v1060 = vpack.c.b16 %v1016, %v1014
        %v1061 = vpack.c.b16 %v1017, %v1015
        %v1062 = vpack.c.b16 %v1020, %v1018
        %v1063 = vpack.c.b16 %v1021, %v1019
        %v1064 = vpack.c.b16 %v1024, %v1022
        %v1065 = vpack.c.b16 %v1025, %v1023
        %v1066 = vpack.c.b16 %v1028, %v1026
        %v1067 = vpack.c.b16 %v1029, %v1027
        %v1068 = vpack.c.b16 %v1032, %v1030
        %v1069 = vpack.c.b16 %v1033, %v1031
        %v1070 = vpack.c.b16 %v1036, %v1034
        %v1071 = vpack.c.b16 %v1037, %v1035
        %v1072 = vpack.c.b16 %v1040, %v1038
        %v1073 = vpack.c.b16 %v1041, %v1039
        %1106 = vmatpush.bf16.xpose.msra.mxu0 %v1056
        %1107 = vmatpush.bf16.xpose.msra.mxu0 %v1054
        %1108 = vmatpush.bf16.xpose.msra.mxu0 %v1052
        %1109 = vmatpush.bf16.xpose.msra.mxu0 %v1050
        %1110 = vmatpush.bf16.xpose.msra.mxu0 %v1048
        %1111 = vmatpush.bf16.xpose.msra.mxu0 %v1046
        %1112 = vmatpush.bf16.xpose.msra.mxu0 %v1044
        %1113 = vmatpush.bf16.xpose.msra.mxu0 %v1042
        %1114 = vmatmul.bf16.gmra.mxu0 %v898
        %v1115 = vpop.f32.mrf.mxu0
        %v1116 = vadd.f32 0.0, %v1115
        %v1117 = vpop.f32.mrf.mxu0
        %v1118 = vadd.f32 0.0, %v1117
        %1119 = vmatmul.bf16.gmra.mxu0 %v900
        %v1120 = vpop.f32.mrf.mxu0
        %v1121 = vadd.f32 0.0, %v1120
        %v1122 = vpop.f32.mrf.mxu0
        %v1123 = vadd.f32 0.0, %v1122
        %1124 = vmatmul.bf16.gmra.mxu0 %v902
        %v1125 = vpop.f32.mrf.mxu0
        %v1126 = vadd.f32 0.0, %v1125
        %v1127 = vpop.f32.mrf.mxu0
        %v1128 = vadd.f32 0.0, %v1127
        %1129 = vmatmul.bf16.gmra.mxu0 %v904
        %v1130 = vpop.f32.mrf.mxu0
        %v1131 = vadd.f32 0.0, %v1130
        %v1132 = vpop.f32.mrf.mxu0
        %v1133 = vadd.f32 0.0, %v1132
        %1134 = vmatmul.bf16.gmra.mxu0 %v906
        %v1135 = vpop.f32.mrf.mxu0
        %v1136 = vadd.f32 0.0, %v1135
        %v1137 = vpop.f32.mrf.mxu0
        %v1138 = vadd.f32 0.0, %v1137
        %1139 = vmatmul.bf16.gmra.mxu0 %v908
        %v1140 = vpop.f32.mrf.mxu0
        %v1141 = vadd.f32 0.0, %v1140
        %v1142 = vpop.f32.mrf.mxu0
        %v1143 = vadd.f32 0.0, %v1142
        %1144 = vmatmul.bf16.gmra.mxu0 %v910
        %v1145 = vpop.f32.mrf.mxu0
        %v1146 = vadd.f32 0.0, %v1145
        %v1147 = vpop.f32.mrf.mxu0
        %v1148 = vadd.f32 0.0, %v1147
        %1149 = vmatmul.bf16.gmra.mxu0 %v912
        %v1150 = vpop.f32.mrf.mxu0
        %v1151 = vadd.f32 0.0, %v1150
        %v1152 = vpop.f32.mrf.mxu0
        %v1153 = vadd.f32 0.0, %v1152
        %1154 = vdwg.mxu0
        %1155 = vmatpush.bf16.xpose.msra.mxu0 %v1057
        %1156 = vmatpush.bf16.xpose.msra.mxu0 %v1055
        %1157 = vmatpush.bf16.xpose.msra.mxu0 %v1053
        %1158 = vmatpush.bf16.xpose.msra.mxu0 %v1051
        %1159 = vmatpush.bf16.xpose.msra.mxu0 %v1049
        %1160 = vmatpush.bf16.xpose.msra.mxu0 %v1047
        %1161 = vmatpush.bf16.xpose.msra.mxu0 %v1045
        %1162 = vmatpush.bf16.xpose.msra.mxu0 %v1043
        %1163 = vmatmul.bf16.gmra.mxu0 %v899
        %v1164 = vpop.f32.mrf.mxu0
        %v1165 = vadd.f32 %v1116, %v1164
        %v1166 = vpop.f32.mrf.mxu0
        %v1167 = vadd.f32 %v1118, %v1166
        %1168 = vmatmul.bf16.gmra.mxu0 %v901
        %v1169 = vpop.f32.mrf.mxu0
        %v1170 = vadd.f32 %v1121, %v1169
        %v1171 = vpop.f32.mrf.mxu0
        %v1172 = vadd.f32 %v1123, %v1171
        %1173 = vmatmul.bf16.gmra.mxu0 %v903
        %v1174 = vpop.f32.mrf.mxu0
        %v1175 = vadd.f32 %v1126, %v1174
        %v1176 = vpop.f32.mrf.mxu0
        %v1177 = vadd.f32 %v1128, %v1176
        %1178 = vmatmul.bf16.gmra.mxu0 %v905
        %v1179 = vpop.f32.mrf.mxu0
        %v1180 = vadd.f32 %v1131, %v1179
        %v1181 = vpop.f32.mrf.mxu0
        %v1182 = vadd.f32 %v1133, %v1181
        %1183 = vmatmul.bf16.gmra.mxu0 %v907
        %v1184 = vpop.f32.mrf.mxu0
        %v1185 = vadd.f32 %v1136, %v1184
        %v1186 = vpop.f32.mrf.mxu0
        %v1187 = vadd.f32 %v1138, %v1186
        %1188 = vmatmul.bf16.gmra.mxu0 %v909
        %v1189 = vpop.f32.mrf.mxu0
        %v1190 = vadd.f32 %v1141, %v1189
        %v1191 = vpop.f32.mrf.mxu0
        %v1192 = vadd.f32 %v1143, %v1191
        %1193 = vmatmul.bf16.gmra.mxu0 %v911
        %v1194 = vpop.f32.mrf.mxu0
        %v1195 = vadd.f32 %v1146, %v1194
        %v1196 = vpop.f32.mrf.mxu0
        %v1197 = vadd.f32 %v1148, %v1196
        %1198 = vmatmul.bf16.gmra.mxu0 %v913
        %v1199 = vpop.f32.mrf.mxu0
        %v1200 = vadd.f32 %v1151, %v1199
        %v1201 = vpop.f32.mrf.mxu0
        %v1202 = vadd.f32 %v1153, %v1201
        %1203 = vdwg.mxu0
        %1204 = vmatpush.bf16.xpose.msra.mxu0 %v1072
        %1205 = vmatpush.bf16.xpose.msra.mxu0 %v1070
        %1206 = vmatpush.bf16.xpose.msra.mxu0 %v1068
        %1207 = vmatpush.bf16.xpose.msra.mxu0 %v1066
        %1208 = vmatpush.bf16.xpose.msra.mxu0 %v1064
        %1209 = vmatpush.bf16.xpose.msra.mxu0 %v1062
        %1210 = vmatpush.bf16.xpose.msra.mxu0 %v1060
        %1211 = vmatpush.bf16.xpose.msra.mxu0 %v1058
        %1212 = vmatmul.bf16.gmra.mxu0 %v898
        %v1213 = vpop.f32.mrf.mxu0
        %v1214 = vadd.f32 0.0, %v1213
        %v1215 = vpop.f32.mrf.mxu0
        %v1216 = vadd.f32 0.0, %v1215
        %1217 = vmatmul.bf16.gmra.mxu0 %v900
        %v1218 = vpop.f32.mrf.mxu0
        %v1219 = vadd.f32 0.0, %v1218
        %v1220 = vpop.f32.mrf.mxu0
        %v1221 = vadd.f32 0.0, %v1220
        %1222 = vmatmul.bf16.gmra.mxu0 %v902
        %v1223 = vpop.f32.mrf.mxu0
        %v1224 = vadd.f32 0.0, %v1223
        %v1225 = vpop.f32.mrf.mxu0
        %v1226 = vadd.f32 0.0, %v1225
        %1227 = vmatmul.bf16.gmra.mxu0 %v904
        %v1228 = vpop.f32.mrf.mxu0
        %v1229 = vadd.f32 0.0, %v1228
        %v1230 = vpop.f32.mrf.mxu0
        %v1231 = vadd.f32 0.0, %v1230
        %1232 = vmatmul.bf16.gmra.mxu0 %v906
        %v1233 = vpop.f32.mrf.mxu0
        %v1234 = vadd.f32 0.0, %v1233
        %v1235 = vpop.f32.mrf.mxu0
        %v1236 = vadd.f32 0.0, %v1235
        %1237 = vmatmul.bf16.gmra.mxu0 %v908
        %v1238 = vpop.f32.mrf.mxu0
        %v1239 = vadd.f32 0.0, %v1238
        %v1240 = vpop.f32.mrf.mxu0
        %v1241 = vadd.f32 0.0, %v1240
        %1242 = vmatmul.bf16.gmra.mxu0 %v910
        %v1243 = vpop.f32.mrf.mxu0
        %v1244 = vadd.f32 0.0, %v1243
        %v1245 = vpop.f32.mrf.mxu0
        %v1246 = vadd.f32 0.0, %v1245
        %1247 = vmatmul.bf16.gmra.mxu0 %v912
        %v1248 = vpop.f32.mrf.mxu0
        %v1249 = vadd.f32 0.0, %v1248
        %v1250 = vpop.f32.mrf.mxu0
        %v1251 = vadd.f32 0.0, %v1250
        %1252 = vdwg.mxu0
        %1253 = vmatpush.bf16.xpose.msra.mxu0 %v1073
        %1254 = vmatpush.bf16.xpose.msra.mxu0 %v1071
        %1255 = vmatpush.bf16.xpose.msra.mxu0 %v1069
        %1256 = vmatpush.bf16.xpose.msra.mxu0 %v1067
        %1257 = vmatpush.bf16.xpose.msra.mxu0 %v1065
        %1258 = vmatpush.bf16.xpose.msra.mxu0 %v1063
        %1259 = vmatpush.bf16.xpose.msra.mxu0 %v1061
        %1260 = vmatpush.bf16.xpose.msra.mxu0 %v1059
        %1261 = vmatmul.bf16.gmra.mxu0 %v899
        %v1262 = vpop.f32.mrf.mxu0
        %v1263 = vadd.f32 %v1214, %v1262
        %v1264 = vpop.f32.mrf.mxu0
        %v1265 = vadd.f32 %v1216, %v1264
        %1266 = vmatmul.bf16.gmra.mxu0 %v901
        %v1267 = vpop.f32.mrf.mxu0
        %v1268 = vadd.f32 %v1219, %v1267
        %v1269 = vpop.f32.mrf.mxu0
        %v1270 = vadd.f32 %v1221, %v1269
        %1271 = vmatmul.bf16.gmra.mxu0 %v903
        %v1272 = vpop.f32.mrf.mxu0
        %v1273 = vadd.f32 %v1224, %v1272
        %v1274 = vpop.f32.mrf.mxu0
        %v1275 = vadd.f32 %v1226, %v1274
        %1276 = vmatmul.bf16.gmra.mxu0 %v905
        %v1277 = vpop.f32.mrf.mxu0
        %v1278 = vadd.f32 %v1229, %v1277
        %v1279 = vpop.f32.mrf.mxu0
        %v1280 = vadd.f32 %v1231, %v1279
        %1281 = vmatmul.bf16.gmra.mxu0 %v907
        %v1282 = vpop.f32.mrf.mxu0
        %v1283 = vadd.f32 %v1234, %v1282
        %v1284 = vpop.f32.mrf.mxu0
        %v1285 = vadd.f32 %v1236, %v1284
        %1286 = vmatmul.bf16.gmra.mxu0 %v909
        %v1287 = vpop.f32.mrf.mxu0
        %v1288 = vadd.f32 %v1239, %v1287
        %v1289 = vpop.f32.mrf.mxu0
        %v1290 = vadd.f32 %v1241, %v1289
        %1291 = vmatmul.bf16.gmra.mxu0 %v911
        %v1292 = vpop.f32.mrf.mxu0
        %v1293 = vadd.f32 %v1244, %v1292
        %v1294 = vpop.f32.mrf.mxu0
        %v1295 = vadd.f32 %v1246, %v1294
        %1296 = vmatmul.bf16.gmra.mxu0 %v913
        %v1297 = vpop.f32.mrf.mxu0
        %v1298 = vadd.f32 %v1249, %v1297
        %v1299 = vpop.f32.mrf.mxu0
        %v1300 = vadd.f32 %v1251, %v1299
        %1301 = vdwg.mxu0
        %v1302 = vld [vmem:[%s264] sm:$0xff]
        %v1303 = vld [vmem:[%s264 + $0x8] sm:$0xff]
        %v1304 = vld [vmem:[%s264 + $0x10] sm:$0xff]
        %v1305 = vld [vmem:[%s264 + $0x18] sm:$0xff]
        %v1306 = vld [vmem:[%s264 + $0x20] sm:$0xff]
        %v1307 = vld [vmem:[%s264 + $0x28] sm:$0xff]
        %v1308 = vld [vmem:[%s264 + $0x30] sm:$0xff]
        %v1309 = vld [vmem:[%s264 + $0x38] sm:$0xff]
        %v1310 = vld [vmem:[%s264 + $0x40] sm:$0xff]
        %v1311 = vld [vmem:[%s264 + $0x48] sm:$0xff]
        %v1312 = vld [vmem:[%s264 + $0x50] sm:$0xff]
        %v1313 = vld [vmem:[%s264 + $0x58] sm:$0xff]
        %v1314 = vld [vmem:[%s264 + $0x60] sm:$0xff]
        %v1315 = vld [vmem:[%s264 + $0x68] sm:$0xff]
        %v1316 = vld [vmem:[%s264 + $0x70] sm:$0xff]
        %v1317 = vld [vmem:[%s264 + $0x78] sm:$0xff]
        %v1318 = vld [vmem:[%s264 + $0x80] sm:$0xff]
        %v1319 = vld [vmem:[%s264 + $0x88] sm:$0xff]
        %v1320 = vld [vmem:[%s264 + $0x90] sm:$0xff]
        %v1321 = vld [vmem:[%s264 + $0x98] sm:$0xff]
        %v1322 = vld [vmem:[%s264 + $0xa0] sm:$0xff]
        %v1323 = vld [vmem:[%s264 + $0xa8] sm:$0xff]
        %v1324 = vld [vmem:[%s264 + $0xb0] sm:$0xff]
        %v1325 = vld [vmem:[%s264 + $0xb8] sm:$0xff]
        %v1326 = vld [vmem:[%s264 + $0xc0] sm:$0xff]
        %v1327 = vld [vmem:[%s264 + $0xc8] sm:$0xff]
        %v1328 = vld [vmem:[%s264 + $0xd0] sm:$0xff]
        %v1329 = vld [vmem:[%s264 + $0xd8] sm:$0xff]
        %v1330 = vld [vmem:[%s264 + $0xe0] sm:$0xff]
        %v1331 = vld [vmem:[%s264 + $0xe8] sm:$0xff]
        %v1332 = vld [vmem:[%s264 + $0xf0] sm:$0xff]
        %v1333 = vld [vmem:[%s264 + $0xf8] sm:$0xff]
        %v1334 = vld [vmem:[%s264 + $0x100] sm:$0xff]
        %v1335 = vld [vmem:[%s264 + $0x108] sm:$0xff]
        %v1336 = vld [vmem:[%s264 + $0x110] sm:$0xff]
        %v1337 = vld [vmem:[%s264 + $0x118] sm:$0xff]
        %v1338 = vld [vmem:[%s264 + $0x120] sm:$0xff]
        %v1339 = vld [vmem:[%s264 + $0x128] sm:$0xff]
        %v1340 = vld [vmem:[%s264 + $0x130] sm:$0xff]
        %v1341 = vld [vmem:[%s264 + $0x138] sm:$0xff]
        %v1342 = vld [vmem:[%s264 + $0x140] sm:$0xff]
        %v1343 = vld [vmem:[%s264 + $0x148] sm:$0xff]
        %v1344 = vld [vmem:[%s264 + $0x150] sm:$0xff]
        %v1345 = vld [vmem:[%s264 + $0x158] sm:$0xff]
        %v1346 = vld [vmem:[%s264 + $0x160] sm:$0xff]
        %v1347 = vld [vmem:[%s264 + $0x168] sm:$0xff]
        %v1348 = vld [vmem:[%s264 + $0x170] sm:$0xff]
        %v1349 = vld [vmem:[%s264 + $0x178] sm:$0xff]
        %v1350 = vld [vmem:[%s264 + $0x180] sm:$0xff]
        %v1351 = vld [vmem:[%s264 + $0x188] sm:$0xff]
        %v1352 = vld [vmem:[%s264 + $0x190] sm:$0xff]
        %v1353 = vld [vmem:[%s264 + $0x198] sm:$0xff]
        %v1354 = vld [vmem:[%s264 + $0x1a0] sm:$0xff]
        %v1355 = vld [vmem:[%s264 + $0x1a8] sm:$0xff]
        %v1356 = vld [vmem:[%s264 + $0x1b0] sm:$0xff]
        %v1357 = vld [vmem:[%s264 + $0x1b8] sm:$0xff]
        %v1358 = vld [vmem:[%s264 + $0x1c0] sm:$0xff]
        %v1359 = vld [vmem:[%s264 + $0x1c8] sm:$0xff]
        %v1360 = vld [vmem:[%s264 + $0x1d0] sm:$0xff]
        %v1361 = vld [vmem:[%s264 + $0x1d8] sm:$0xff]
        %v1362 = vld [vmem:[%s264 + $0x1e0] sm:$0xff]
        %v1363 = vld [vmem:[%s264 + $0x1e8] sm:$0xff]
        %v1364 = vld [vmem:[%s264 + $0x1f0] sm:$0xff]
        %v1365 = vld [vmem:[%s264 + $0x1f8] sm:$0xff]
        %v1366 = vpack.c.bf16 %v1304, %v1302
        %v1367 = vpack.c.bf16 %v1305, %v1303
        %v1368 = vpack.c.bf16 %v1308, %v1306
        %v1369 = vpack.c.bf16 %v1309, %v1307
        %v1370 = vpack.c.bf16 %v1312, %v1310
        %v1371 = vpack.c.bf16 %v1313, %v1311
        %v1372 = vpack.c.bf16 %v1316, %v1314
        %v1373 = vpack.c.bf16 %v1317, %v1315
        %v1374 = vpack.c.bf16 %v1320, %v1318
        %v1375 = vpack.c.bf16 %v1321, %v1319
        %v1376 = vpack.c.bf16 %v1324, %v1322
        %v1377 = vpack.c.bf16 %v1325, %v1323
        %v1378 = vpack.c.bf16 %v1328, %v1326
        %v1379 = vpack.c.bf16 %v1329, %v1327
        %v1380 = vpack.c.bf16 %v1332, %v1330
        %v1381 = vpack.c.bf16 %v1333, %v1331
        %v1382 = vpack.c.bf16 %v1336, %v1334
        %v1383 = vpack.c.bf16 %v1337, %v1335
        %v1384 = vpack.c.bf16 %v1340, %v1338
        %v1385 = vpack.c.bf16 %v1341, %v1339
        %v1386 = vpack.c.bf16 %v1344, %v1342
        %v1387 = vpack.c.bf16 %v1345, %v1343
        %v1388 = vpack.c.bf16 %v1348, %v1346
        %v1389 = vpack.c.bf16 %v1349, %v1347
        %v1390 = vpack.c.bf16 %v1352, %v1350
        %v1391 = vpack.c.bf16 %v1353, %v1351
        %v1392 = vpack.c.bf16 %v1356, %v1354
        %v1393 = vpack.c.bf16 %v1357, %v1355
        %v1394 = vpack.c.bf16 %v1360, %v1358
        %v1395 = vpack.c.bf16 %v1361, %v1359
        %v1396 = vpack.c.bf16 %v1364, %v1362
        %v1397 = vpack.c.bf16 %v1365, %v1363
        %v1398 = vld [vmem:[%s284] sm:$0xff]
        %v1399 = vld [vmem:[%s284 + $0x8] sm:$0xff]
        %v1400 = vld [vmem:[%s284 + $0x10] sm:$0xff]
        %v1401 = vld [vmem:[%s284 + $0x18] sm:$0xff]
        %v1402 = vld [vmem:[%s284 + $0x20] sm:$0xff]
        %v1403 = vld [vmem:[%s284 + $0x28] sm:$0xff]
        %v1404 = vld [vmem:[%s284 + $0x30] sm:$0xff]
        %v1405 = vld [vmem:[%s284 + $0x38] sm:$0xff]
        %v1406 = vld [vmem:[%s284 + $0x40] sm:$0xff]
        %v1407 = vld [vmem:[%s284 + $0x48] sm:$0xff]
        %v1408 = vld [vmem:[%s284 + $0x50] sm:$0xff]
        %v1409 = vld [vmem:[%s284 + $0x58] sm:$0xff]
        %v1410 = vld [vmem:[%s284 + $0x60] sm:$0xff]
        %v1411 = vld [vmem:[%s284 + $0x68] sm:$0xff]
        %v1412 = vld [vmem:[%s284 + $0x70] sm:$0xff]
        %v1413 = vld [vmem:[%s284 + $0x78] sm:$0xff]
        %v1430 = vunpack.c.l.b16 %v1398
        %v1431 = vunpack.c.h.b16 %v1398
        %v1432 = vunpack.c.l.b16 %v1399
        %v1433 = vunpack.c.h.b16 %v1399
        %v1434 = vunpack.c.l.b16 %v1400
        %v1435 = vunpack.c.h.b16 %v1400
        %v1436 = vunpack.c.l.b16 %v1401
        %v1437 = vunpack.c.h.b16 %v1401
        %v1438 = vunpack.c.l.b16 %v1402
        %v1439 = vunpack.c.h.b16 %v1402
        %v1440 = vunpack.c.l.b16 %v1403
        %v1441 = vunpack.c.h.b16 %v1403
        %v1442 = vunpack.c.l.b16 %v1404
        %v1443 = vunpack.c.h.b16 %v1404
        %v1444 = vunpack.c.l.b16 %v1405
        %v1445 = vunpack.c.h.b16 %v1405
        %v1446 = vunpack.c.l.b16 %v1406
        %v1447 = vunpack.c.h.b16 %v1406
        %v1448 = vunpack.c.l.b16 %v1407
        %v1449 = vunpack.c.h.b16 %v1407
        %v1450 = vunpack.c.l.b16 %v1408
        %v1451 = vunpack.c.h.b16 %v1408
        %v1452 = vunpack.c.l.b16 %v1409
        %v1453 = vunpack.c.h.b16 %v1409
        %v1454 = vunpack.c.l.b16 %v1410
        %v1455 = vunpack.c.h.b16 %v1410
        %v1456 = vunpack.c.l.b16 %v1411
        %v1457 = vunpack.c.h.b16 %v1411
        %v1458 = vunpack.c.l.b16 %v1412
        %v1459 = vunpack.c.h.b16 %v1412
        %v1460 = vunpack.c.l.b16 %v1413
        %v1461 = vunpack.c.h.b16 %v1413
        %v1462 = vpack.c.b16 %v1432, %v1430
        %v1463 = vpack.c.b16 %v1433, %v1431
        %v1464 = vpack.c.b16 %v1436, %v1434
        %v1465 = vpack.c.b16 %v1437, %v1435
        %v1466 = vpack.c.b16 %v1440, %v1438
        %v1467 = vpack.c.b16 %v1441, %v1439
        %v1468 = vpack.c.b16 %v1444, %v1442
        %v1469 = vpack.c.b16 %v1445, %v1443
        %v1470 = vpack.c.b16 %v1448, %v1446
        %v1471 = vpack.c.b16 %v1449, %v1447
        %v1472 = vpack.c.b16 %v1452, %v1450
        %v1473 = vpack.c.b16 %v1453, %v1451
        %v1474 = vpack.c.b16 %v1456, %v1454
        %v1475 = vpack.c.b16 %v1457, %v1455
        %v1476 = vpack.c.b16 %v1460, %v1458
        %v1477 = vpack.c.b16 %v1461, %v1459
        %1494 = vmatpush.bf16.xpose.msra.mxu0 %v1380
        %1495 = vmatpush.bf16.xpose.msra.mxu0 %v1378
        %1496 = vmatpush.bf16.xpose.msra.mxu0 %v1376
        %1497 = vmatpush.bf16.xpose.msra.mxu0 %v1374
        %1498 = vmatpush.bf16.xpose.msra.mxu0 %v1372
        %1499 = vmatpush.bf16.xpose.msra.mxu0 %v1370
        %1500 = vmatpush.bf16.xpose.msra.mxu0 %v1368
        %1501 = vmatpush.bf16.xpose.msra.mxu0 %v1366
        %1502 = vmatmul.bf16.gmra.mxu0 %v1462
        %v1503 = vpop.f32.mrf.mxu0
        %v1504 = vadd.f32 0.0, %v1503
        %v1505 = vpop.f32.mrf.mxu0
        %v1506 = vadd.f32 0.0, %v1505
        %1507 = vmatmul.bf16.gmra.mxu0 %v1464
        %v1508 = vpop.f32.mrf.mxu0
        %v1509 = vadd.f32 0.0, %v1508
        %v1510 = vpop.f32.mrf.mxu0
        %v1511 = vadd.f32 0.0, %v1510
        %1512 = vmatmul.bf16.gmra.mxu0 %v1466
        %v1513 = vpop.f32.mrf.mxu0
        %v1514 = vadd.f32 0.0, %v1513
        %v1515 = vpop.f32.mrf.mxu0
        %v1516 = vadd.f32 0.0, %v1515
        %1517 = vmatmul.bf16.gmra.mxu0 %v1468
        %v1518 = vpop.f32.mrf.mxu0
        %v1519 = vadd.f32 0.0, %v1518
        %v1520 = vpop.f32.mrf.mxu0
        %v1521 = vadd.f32 0.0, %v1520
        %1522 = vmatmul.bf16.gmra.mxu0 %v1470
        %v1523 = vpop.f32.mrf.mxu0
        %v1524 = vadd.f32 0.0, %v1523
        %v1525 = vpop.f32.mrf.mxu0
        %v1526 = vadd.f32 0.0, %v1525
        %1527 = vmatmul.bf16.gmra.mxu0 %v1472
        %v1528 = vpop.f32.mrf.mxu0
        %v1529 = vadd.f32 0.0, %v1528
        %v1530 = vpop.f32.mrf.mxu0
        %v1531 = vadd.f32 0.0, %v1530
        %1532 = vmatmul.bf16.gmra.mxu0 %v1474
        %v1533 = vpop.f32.mrf.mxu0
        %v1534 = vadd.f32 0.0, %v1533
        %v1535 = vpop.f32.mrf.mxu0
        %v1536 = vadd.f32 0.0, %v1535
        %1537 = vmatmul.bf16.gmra.mxu0 %v1476
        %v1538 = vpop.f32.mrf.mxu0
        %v1539 = vadd.f32 0.0, %v1538
        %v1540 = vpop.f32.mrf.mxu0
        %v1541 = vadd.f32 0.0, %v1540
        %1542 = vdwg.mxu0
        %1543 = vmatpush.bf16.xpose.msra.mxu0 %v1381
        %1544 = vmatpush.bf16.xpose.msra.mxu0 %v1379
        %1545 = vmatpush.bf16.xpose.msra.mxu0 %v1377
        %1546 = vmatpush.bf16.xpose.msra.mxu0 %v1375
        %1547 = vmatpush.bf16.xpose.msra.mxu0 %v1373
        %1548 = vmatpush.bf16.xpose.msra.mxu0 %v1371
        %1549 = vmatpush.bf16.xpose.msra.mxu0 %v1369
        %1550 = vmatpush.bf16.xpose.msra.mxu0 %v1367
        %1551 = vmatmul.bf16.gmra.mxu0 %v1463
        %v1552 = vpop.f32.mrf.mxu0
        %v1553 = vadd.f32 %v1504, %v1552
        %v1554 = vpop.f32.mrf.mxu0
        %v1555 = vadd.f32 %v1506, %v1554
        %1556 = vmatmul.bf16.gmra.mxu0 %v1465
        %v1557 = vpop.f32.mrf.mxu0
        %v1558 = vadd.f32 %v1509, %v1557
        %v1559 = vpop.f32.mrf.mxu0
        %v1560 = vadd.f32 %v1511, %v1559
        %1561 = vmatmul.bf16.gmra.mxu0 %v1467
        %v1562 = vpop.f32.mrf.mxu0
        %v1563 = vadd.f32 %v1514, %v1562
        %v1564 = vpop.f32.mrf.mxu0
        %v1565 = vadd.f32 %v1516, %v1564
        %1566 = vmatmul.bf16.gmra.mxu0 %v1469
        %v1567 = vpop.f32.mrf.mxu0
        %v1568 = vadd.f32 %v1519, %v1567
        %v1569 = vpop.f32.mrf.mxu0
        %v1570 = vadd.f32 %v1521, %v1569
        %1571 = vmatmul.bf16.gmra.mxu0 %v1471
        %v1572 = vpop.f32.mrf.mxu0
        %v1573 = vadd.f32 %v1524, %v1572
        %v1574 = vpop.f32.mrf.mxu0
        %v1575 = vadd.f32 %v1526, %v1574
        %1576 = vmatmul.bf16.gmra.mxu0 %v1473
        %v1577 = vpop.f32.mrf.mxu0
        %v1578 = vadd.f32 %v1529, %v1577
        %v1579 = vpop.f32.mrf.mxu0
        %v1580 = vadd.f32 %v1531, %v1579
        %1581 = vmatmul.bf16.gmra.mxu0 %v1475
        %v1582 = vpop.f32.mrf.mxu0
        %v1583 = vadd.f32 %v1534, %v1582
        %v1584 = vpop.f32.mrf.mxu0
        %v1585 = vadd.f32 %v1536, %v1584
        %1586 = vmatmul.bf16.gmra.mxu0 %v1477
        %v1587 = vpop.f32.mrf.mxu0
        %v1588 = vadd.f32 %v1539, %v1587
        %v1589 = vpop.f32.mrf.mxu0
        %v1590 = vadd.f32 %v1541, %v1589
        %1591 = vdwg.mxu0
        %1592 = vmatpush.bf16.xpose.msra.mxu0 %v1396
        %1593 = vmatpush.bf16.xpose.msra.mxu0 %v1394
        %1594 = vmatpush.bf16.xpose.msra.mxu0 %v1392
        %1595 = vmatpush.bf16.xpose.msra.mxu0 %v1390
        %1596 = vmatpush.bf16.xpose.msra.mxu0 %v1388
        %1597 = vmatpush.bf16.xpose.msra.mxu0 %v1386
        %1598 = vmatpush.bf16.xpose.msra.mxu0 %v1384
        %1599 = vmatpush.bf16.xpose.msra.mxu0 %v1382
        %1600 = vmatmul.bf16.gmra.mxu0 %v1462
        %v1601 = vpop.f32.mrf.mxu0
        %v1602 = vadd.f32 0.0, %v1601
        %v1603 = vpop.f32.mrf.mxu0
        %v1604 = vadd.f32 0.0, %v1603
        %1605 = vmatmul.bf16.gmra.mxu0 %v1464
        %v1606 = vpop.f32.mrf.mxu0
        %v1607 = vadd.f32 0.0, %v1606
        %v1608 = vpop.f32.mrf.mxu0
        %v1609 = vadd.f32 0.0, %v1608
        %1610 = vmatmul.bf16.gmra.mxu0 %v1466
        %v1611 = vpop.f32.mrf.mxu0
        %v1612 = vadd.f32 0.0, %v1611
        %v1613 = vpop.f32.mrf.mxu0
        %v1614 = vadd.f32 0.0, %v1613
        %1615 = vmatmul.bf16.gmra.mxu0 %v1468
        %v1616 = vpop.f32.mrf.mxu0
        %v1617 = vadd.f32 0.0, %v1616
        %v1618 = vpop.f32.mrf.mxu0
        %v1619 = vadd.f32 0.0, %v1618
        %1620 = vmatmul.bf16.gmra.mxu0 %v1470
        %v1621 = vpop.f32.mrf.mxu0
        %v1622 = vadd.f32 0.0, %v1621
        %v1623 = vpop.f32.mrf.mxu0
        %v1624 = vadd.f32 0.0, %v1623
        %1625 = vmatmul.bf16.gmra.mxu0 %v1472
        %v1626 = vpop.f32.mrf.mxu0
        %v1627 = vadd.f32 0.0, %v1626
        %v1628 = vpop.f32.mrf.mxu0
        %v1629 = vadd.f32 0.0, %v1628
        %1630 = vmatmul.bf16.gmra.mxu0 %v1474
        %v1631 = vpop.f32.mrf.mxu0
        %v1632 = vadd.f32 0.0, %v1631
        %v1633 = vpop.f32.mrf.mxu0
        %v1634 = vadd.f32 0.0, %v1633
        %1635 = vmatmul.bf16.gmra.mxu0 %v1476
        %v1636 = vpop.f32.mrf.mxu0
        %v1637 = vadd.f32 0.0, %v1636
        %v1638 = vpop.f32.mrf.mxu0
        %v1639 = vadd.f32 0.0, %v1638
        %1640 = vdwg.mxu0
        %1641 = vmatpush.bf16.xpose.msra.mxu0 %v1397
        %1642 = vmatpush.bf16.xpose.msra.mxu0 %v1395
        %1643 = vmatpush.bf16.xpose.msra.mxu0 %v1393
        %1644 = vmatpush.bf16.xpose.msra.mxu0 %v1391
        %1645 = vmatpush.bf16.xpose.msra.mxu0 %v1389
        %1646 = vmatpush.bf16.xpose.msra.mxu0 %v1387
        %1647 = vmatpush.bf16.xpose.msra.mxu0 %v1385
        %1648 = vmatpush.bf16.xpose.msra.mxu0 %v1383
        %1649 = vmatmul.bf16.gmra.mxu0 %v1463
        %v1650 = vpop.f32.mrf.mxu0
        %v1651 = vadd.f32 %v1602, %v1650
        %v1652 = vpop.f32.mrf.mxu0
        %v1653 = vadd.f32 %v1604, %v1652
        %1654 = vmatmul.bf16.gmra.mxu0 %v1465
        %v1655 = vpop.f32.mrf.mxu0
        %v1656 = vadd.f32 %v1607, %v1655
        %v1657 = vpop.f32.mrf.mxu0
        %v1658 = vadd.f32 %v1609, %v1657
        %1659 = vmatmul.bf16.gmra.mxu0 %v1467
        %v1660 = vpop.f32.mrf.mxu0
        %v1661 = vadd.f32 %v1612, %v1660
        %v1662 = vpop.f32.mrf.mxu0
        %v1663 = vadd.f32 %v1614, %v1662
        %1664 = vmatmul.bf16.gmra.mxu0 %v1469
        %v1665 = vpop.f32.mrf.mxu0
        %v1666 = vadd.f32 %v1617, %v1665
        %v1667 = vpop.f32.mrf.mxu0
        %v1668 = vadd.f32 %v1619, %v1667
        %1669 = vmatmul.bf16.gmra.mxu0 %v1471
        %v1670 = vpop.f32.mrf.mxu0
        %v1671 = vadd.f32 %v1622, %v1670
        %v1672 = vpop.f32.mrf.mxu0
        %v1673 = vadd.f32 %v1624, %v1672
        %1674 = vmatmul.bf16.gmra.mxu0 %v1473
        %v1675 = vpop.f32.mrf.mxu0
        %v1676 = vadd.f32 %v1627, %v1675
        %v1677 = vpop.f32.mrf.mxu0
        %v1678 = vadd.f32 %v1629, %v1677
        %1679 = vmatmul.bf16.gmra.mxu0 %v1475
        %v1680 = vpop.f32.mrf.mxu0
        %v1681 = vadd.f32 %v1632, %v1680
        %v1682 = vpop.f32.mrf.mxu0
        %v1683 = vadd.f32 %v1634, %v1682
        %1684 = vmatmul.bf16.gmra.mxu0 %v1477
        %v1685 = vpop.f32.mrf.mxu0
        %v1686 = vadd.f32 %v1637, %v1685
        %v1687 = vpop.f32.mrf.mxu0
        %v1688 = vadd.f32 %v1639, %v1687
        %1689 = vdwg.mxu0
        %v1690 = vld [vmem:[#allocation2] sm:$0xff]
        %v1691 = vld [vmem:[#allocation2 + $0x8] sm:$0xff]
        %v1692 = vld [vmem:[#allocation2 + $0x10] sm:$0xff]
        %v1693 = vld [vmem:[#allocation2 + $0x18] sm:$0xff]
        %v1694 = vld [vmem:[#allocation2 + $0x20] sm:$0xff]
        %v1695 = vld [vmem:[#allocation2 + $0x28] sm:$0xff]
        %v1696 = vld [vmem:[#allocation2 + $0x30] sm:$0xff]
        %v1697 = vld [vmem:[#allocation2 + $0x38] sm:$0xff]
        %v1698 = vld [vmem:[#allocation2 + $0x40] sm:$0xff]
        %v1699 = vld [vmem:[#allocation2 + $0x48] sm:$0xff]
        %v1700 = vld [vmem:[#allocation2 + $0x50] sm:$0xff]
        %v1701 = vld [vmem:[#allocation2 + $0x58] sm:$0xff]
        %v1702 = vld [vmem:[#allocation2 + $0x60] sm:$0xff]
        %v1703 = vld [vmem:[#allocation2 + $0x68] sm:$0xff]
        %v1704 = vld [vmem:[#allocation2 + $0x70] sm:$0xff]
        %v1705 = vld [vmem:[#allocation2 + $0x78] sm:$0xff]
        %v1706 = vpack.c.bf16 %v1167, %v1165
        %v1707 = vpack.c.bf16 %v1265, %v1263
        %v1708 = vpack.c.bf16 %v1172, %v1170
        %v1709 = vpack.c.bf16 %v1270, %v1268
        %v1710 = vpack.c.bf16 %v1177, %v1175
        %v1711 = vpack.c.bf16 %v1275, %v1273
        %v1712 = vpack.c.bf16 %v1182, %v1180
        %v1713 = vpack.c.bf16 %v1280, %v1278
        %v1714 = vpack.c.bf16 %v1187, %v1185
        %v1715 = vpack.c.bf16 %v1285, %v1283
        %v1716 = vpack.c.bf16 %v1192, %v1190
        %v1717 = vpack.c.bf16 %v1290, %v1288
        %v1718 = vpack.c.bf16 %v1197, %v1195
        %v1719 = vpack.c.bf16 %v1295, %v1293
        %v1720 = vpack.c.bf16 %v1202, %v1200
        %v1721 = vpack.c.bf16 %v1300, %v1298
        %v1738 = vunpack.c.l.b16 %v1690
        %v1739 = vunpack.c.h.b16 %v1690
        %v1740 = vunpack.c.l.b16 %v1691
        %v1741 = vunpack.c.h.b16 %v1691
        %v1742 = vunpack.c.l.b16 %v1692
        %v1743 = vunpack.c.h.b16 %v1692
        %v1744 = vunpack.c.l.b16 %v1693
        %v1745 = vunpack.c.h.b16 %v1693
        %v1746 = vunpack.c.l.b16 %v1694
        %v1747 = vunpack.c.h.b16 %v1694
        %v1748 = vunpack.c.l.b16 %v1695
        %v1749 = vunpack.c.h.b16 %v1695
        %v1750 = vunpack.c.l.b16 %v1696
        %v1751 = vunpack.c.h.b16 %v1696
        %v1752 = vunpack.c.l.b16 %v1697
        %v1753 = vunpack.c.h.b16 %v1697
        %v1754 = vunpack.c.l.b16 %v1698
        %v1755 = vunpack.c.h.b16 %v1698
        %v1756 = vunpack.c.l.b16 %v1699
        %v1757 = vunpack.c.h.b16 %v1699
        %v1758 = vunpack.c.l.b16 %v1700
        %v1759 = vunpack.c.h.b16 %v1700
        %v1760 = vunpack.c.l.b16 %v1701
        %v1761 = vunpack.c.h.b16 %v1701
        %v1762 = vunpack.c.l.b16 %v1702
        %v1763 = vunpack.c.h.b16 %v1702
        %v1764 = vunpack.c.l.b16 %v1703
        %v1765 = vunpack.c.h.b16 %v1703
        %v1766 = vunpack.c.l.b16 %v1704
        %v1767 = vunpack.c.h.b16 %v1704
        %v1768 = vunpack.c.l.b16 %v1705
        %v1769 = vunpack.c.h.b16 %v1705
        %v1770 = vpack.c.b16 %v1740, %v1738
        %v1771 = vpack.c.b16 %v1741, %v1739
        %v1772 = vpack.c.b16 %v1744, %v1742
        %v1773 = vpack.c.b16 %v1745, %v1743
        %v1774 = vpack.c.b16 %v1748, %v1746
        %v1775 = vpack.c.b16 %v1749, %v1747
        %v1776 = vpack.c.b16 %v1752, %v1750
        %v1777 = vpack.c.b16 %v1753, %v1751
        %v1778 = vpack.c.b16 %v1756, %v1754
        %v1779 = vpack.c.b16 %v1757, %v1755
        %v1780 = vpack.c.b16 %v1760, %v1758
        %v1781 = vpack.c.b16 %v1761, %v1759
        %v1782 = vpack.c.b16 %v1764, %v1762
        %v1783 = vpack.c.b16 %v1765, %v1763
        %v1784 = vpack.c.b16 %v1768, %v1766
        %v1785 = vpack.c.b16 %v1769, %v1767
        %1802 = vmatpush.bf16.xpose.msra.mxu0 %v1720
        %1803 = vmatpush.bf16.xpose.msra.mxu0 %v1718
        %1804 = vmatpush.bf16.xpose.msra.mxu0 %v1716
        %1805 = vmatpush.bf16.xpose.msra.mxu0 %v1714
        %1806 = vmatpush.bf16.xpose.msra.mxu0 %v1712
        %1807 = vmatpush.bf16.xpose.msra.mxu0 %v1710
        %1808 = vmatpush.bf16.xpose.msra.mxu0 %v1708
        %1809 = vmatpush.bf16.xpose.msra.mxu0 %v1706
        %1810 = vmatmul.bf16.gmra.mxu0 %v1770
        %v1811 = vpop.f32.mrf.mxu0
        %v1812 = vadd.f32 0.0, %v1811
        %v1813 = vpop.f32.mrf.mxu0
        %v1814 = vadd.f32 0.0, %v1813
        %1815 = vmatmul.bf16.gmra.mxu0 %v1772
        %v1816 = vpop.f32.mrf.mxu0
        %v1817 = vadd.f32 0.0, %v1816
        %v1818 = vpop.f32.mrf.mxu0
        %v1819 = vadd.f32 0.0, %v1818
        %1820 = vmatmul.bf16.gmra.mxu0 %v1774
        %v1821 = vpop.f32.mrf.mxu0
        %v1822 = vadd.f32 0.0, %v1821
        %v1823 = vpop.f32.mrf.mxu0
        %v1824 = vadd.f32 0.0, %v1823
        %1825 = vmatmul.bf16.gmra.mxu0 %v1776
        %v1826 = vpop.f32.mrf.mxu0
        %v1827 = vadd.f32 0.0, %v1826
        %v1828 = vpop.f32.mrf.mxu0
        %v1829 = vadd.f32 0.0, %v1828
        %1830 = vmatmul.bf16.gmra.mxu0 %v1778
        %v1831 = vpop.f32.mrf.mxu0
        %v1832 = vadd.f32 0.0, %v1831
        %v1833 = vpop.f32.mrf.mxu0
        %v1834 = vadd.f32 0.0, %v1833
        %1835 = vmatmul.bf16.gmra.mxu0 %v1780
        %v1836 = vpop.f32.mrf.mxu0
        %v1837 = vadd.f32 0.0, %v1836
        %v1838 = vpop.f32.mrf.mxu0
        %v1839 = vadd.f32 0.0, %v1838
        %1840 = vmatmul.bf16.gmra.mxu0 %v1782
        %v1841 = vpop.f32.mrf.mxu0
        %v1842 = vadd.f32 0.0, %v1841
        %v1843 = vpop.f32.mrf.mxu0
        %v1844 = vadd.f32 0.0, %v1843
        %1845 = vmatmul.bf16.gmra.mxu0 %v1784
        %v1846 = vpop.f32.mrf.mxu0
        %v1847 = vadd.f32 0.0, %v1846
        %v1848 = vpop.f32.mrf.mxu0
        %v1849 = vadd.f32 0.0, %v1848
        %1850 = vdwg.mxu0
        %1851 = vmatpush.bf16.xpose.msra.mxu0 %v1721
        %1852 = vmatpush.bf16.xpose.msra.mxu0 %v1719
        %1853 = vmatpush.bf16.xpose.msra.mxu0 %v1717
        %1854 = vmatpush.bf16.xpose.msra.mxu0 %v1715
        %1855 = vmatpush.bf16.xpose.msra.mxu0 %v1713
        %1856 = vmatpush.bf16.xpose.msra.mxu0 %v1711
        %1857 = vmatpush.bf16.xpose.msra.mxu0 %v1709
        %1858 = vmatpush.bf16.xpose.msra.mxu0 %v1707
        %1859 = vmatmul.bf16.gmra.mxu0 %v1771
        %v1860 = vpop.f32.mrf.mxu0
        %v1861 = vadd.f32 %v1812, %v1860
        %v1862 = vpop.f32.mrf.mxu0
        %v1863 = vadd.f32 %v1814, %v1862
        %1864 = vmatmul.bf16.gmra.mxu0 %v1773
        %v1865 = vpop.f32.mrf.mxu0
        %v1866 = vadd.f32 %v1817, %v1865
        %v1867 = vpop.f32.mrf.mxu0
        %v1868 = vadd.f32 %v1819, %v1867
        %1869 = vmatmul.bf16.gmra.mxu0 %v1775
        %v1870 = vpop.f32.mrf.mxu0
        %v1871 = vadd.f32 %v1822, %v1870
        %v1872 = vpop.f32.mrf.mxu0
        %v1873 = vadd.f32 %v1824, %v1872
        %1874 = vmatmul.bf16.gmra.mxu0 %v1777
        %v1875 = vpop.f32.mrf.mxu0
        %v1876 = vadd.f32 %v1827, %v1875
        %v1877 = vpop.f32.mrf.mxu0
        %v1878 = vadd.f32 %v1829, %v1877
        %1879 = vmatmul.bf16.gmra.mxu0 %v1779
        %v1880 = vpop.f32.mrf.mxu0
        %v1881 = vadd.f32 %v1832, %v1880
        %v1882 = vpop.f32.mrf.mxu0
        %v1883 = vadd.f32 %v1834, %v1882
        %1884 = vmatmul.bf16.gmra.mxu0 %v1781
        %v1885 = vpop.f32.mrf.mxu0
        %v1886 = vadd.f32 %v1837, %v1885
        %v1887 = vpop.f32.mrf.mxu0
        %v1888 = vadd.f32 %v1839, %v1887
        %1889 = vmatmul.bf16.gmra.mxu0 %v1783
        %v1890 = vpop.f32.mrf.mxu0
        %v1891 = vadd.f32 %v1842, %v1890
        %v1892 = vpop.f32.mrf.mxu0
        %v1893 = vadd.f32 %v1844, %v1892
        %1894 = vmatmul.bf16.gmra.mxu0 %v1785
        %v1895 = vpop.f32.mrf.mxu0
        %v1896 = vadd.f32 %v1847, %v1895
        %v1897 = vpop.f32.mrf.mxu0
        %v1898 = vadd.f32 %v1849, %v1897
        %1899 = vdwg.mxu0
        %v1900 = vld [vmem:[#allocation3] sm:$0xff]
        %v1901 = vld [vmem:[#allocation3 + $0x8] sm:$0xff]
        %v1902 = vld [vmem:[#allocation3 + $0x10] sm:$0xff]
        %v1903 = vld [vmem:[#allocation3 + $0x18] sm:$0xff]
        %v1904 = vld [vmem:[#allocation3 + $0x20] sm:$0xff]
        %v1905 = vld [vmem:[#allocation3 + $0x28] sm:$0xff]
        %v1906 = vld [vmem:[#allocation3 + $0x30] sm:$0xff]
        %v1907 = vld [vmem:[#allocation3 + $0x38] sm:$0xff]
        %v1908 = vld [vmem:[#allocation3 + $0x40] sm:$0xff]
        %v1909 = vld [vmem:[#allocation3 + $0x48] sm:$0xff]
        %v1910 = vld [vmem:[#allocation3 + $0x50] sm:$0xff]
        %v1911 = vld [vmem:[#allocation3 + $0x58] sm:$0xff]
        %v1912 = vld [vmem:[#allocation3 + $0x60] sm:$0xff]
        %v1913 = vld [vmem:[#allocation3 + $0x68] sm:$0xff]
        %v1914 = vld [vmem:[#allocation3 + $0x70] sm:$0xff]
        %v1915 = vld [vmem:[#allocation3 + $0x78] sm:$0xff]
        %1916 = vmax.xlane.f32.xlu0 %v1861
        %v1917 = vpop.xlane.xlu0 %1916
        %1918 = vmax.xlane.f32.xlu0 %v1863
        %v1919 = vpop.xlane.xlu0 %1918
        %1920 = vmax.xlane.f32.xlu0 %v1866
        %v1921 = vpop.xlane.xlu0 %1920
        %1922 = vmax.xlane.f32.xlu0 %v1868
        %v1923 = vpop.xlane.xlu0 %1922
        %1924 = vmax.xlane.f32.xlu0 %v1871
        %v1925 = vpop.xlane.xlu0 %1924
        %1926 = vmax.xlane.f32.xlu0 %v1873
        %v1927 = vpop.xlane.xlu0 %1926
        %1928 = vmax.xlane.f32.xlu0 %v1876
        %v1929 = vpop.xlane.xlu0 %1928
        %1930 = vmax.xlane.f32.xlu0 %v1878
        %v1931 = vpop.xlane.xlu0 %1930
        %1932 = vmax.xlane.f32.xlu0 %v1881
        %v1933 = vpop.xlane.xlu0 %1932
        %1934 = vmax.xlane.f32.xlu0 %v1883
        %v1935 = vpop.xlane.xlu0 %1934
        %1936 = vmax.xlane.f32.xlu0 %v1886
        %v1937 = vpop.xlane.xlu0 %1936
        %1938 = vmax.xlane.f32.xlu0 %v1888
        %v1939 = vpop.xlane.xlu0 %1938
        %1940 = vmax.xlane.f32.xlu0 %v1891
        %v1941 = vpop.xlane.xlu0 %1940
        %1942 = vmax.xlane.f32.xlu0 %v1893
        %v1943 = vpop.xlane.xlu0 %1942
        %1944 = vmax.xlane.f32.xlu0 %v1896
        %v1945 = vpop.xlane.xlu0 %1944
        %1946 = vmax.xlane.f32.xlu0 %v1898
        %v1947 = vpop.xlane.xlu0 %1946
        %v1948 = vmax.f32 %v1900, %v1917
        %v1949 = vmax.f32 %v1901, %v1919
        %v1950 = vmax.f32 %v1902, %v1921
        %v1951 = vmax.f32 %v1903, %v1923
        %v1952 = vmax.f32 %v1904, %v1925
        %v1953 = vmax.f32 %v1905, %v1927
        %v1954 = vmax.f32 %v1906, %v1929
        %v1955 = vmax.f32 %v1907, %v1931
        %v1956 = vmax.f32 %v1908, %v1933
        %v1957 = vmax.f32 %v1909, %v1935
        %v1958 = vmax.f32 %v1910, %v1937
        %v1959 = vmax.f32 %v1911, %v1939
        %v1960 = vmax.f32 %v1912, %v1941
        %v1961 = vmax.f32 %v1913, %v1943
        %v1962 = vmax.f32 %v1914, %v1945
        %v1963 = vmax.f32 %v1915, %v1947
        %v1964 = vsub.f32 %v1900, %v1948
        %v1965 = vsub.f32 %v1901, %v1949
        %v1966 = vsub.f32 %v1902, %v1950
        %v1967 = vsub.f32 %v1903, %v1951
        %v1968 = vsub.f32 %v1904, %v1952
        %v1969 = vsub.f32 %v1905, %v1953
        %v1970 = vsub.f32 %v1906, %v1954
        %v1971 = vsub.f32 %v1907, %v1955
        %v1972 = vsub.f32 %v1908, %v1956
        %v1973 = vsub.f32 %v1909, %v1957
        %v1974 = vsub.f32 %v1910, %v1958
        %v1975 = vsub.f32 %v1911, %v1959
        %v1976 = vsub.f32 %v1912, %v1960
        %v1977 = vsub.f32 %v1913, %v1961
        %v1978 = vsub.f32 %v1914, %v1962
        %v1979 = vsub.f32 %v1915, %v1963
        %v1980 = vmul.f32 %v1964, 1.442695
        %v1981 = vpow.pop %v1980
        %v1982 = vmul.f32 %v1965, 1.442695
        %v1983 = vpow.pop %v1982
        %v1984 = vmul.f32 %v1966, 1.442695
        %v1985 = vpow.pop %v1984
        %v1986 = vmul.f32 %v1967, 1.442695
        %v1987 = vpow.pop %v1986
        %v1988 = vmul.f32 %v1968, 1.442695
        %v1989 = vpow.pop %v1988
        %v1990 = vmul.f32 %v1969, 1.442695
        %v1991 = vpow.pop %v1990
        %v1992 = vmul.f32 %v1970, 1.442695
        %v1993 = vpow.pop %v1992
        %v1994 = vmul.f32 %v1971, 1.442695
        %v1995 = vpow.pop %v1994
        %v1996 = vmul.f32 %v1972, 1.442695
        %v1997 = vpow.pop %v1996
        %v1998 = vmul.f32 %v1973, 1.442695
        %v1999 = vpow.pop %v1998
        %v2000 = vmul.f32 %v1974, 1.442695
        %v2001 = vpow.pop %v2000
        %v2002 = vmul.f32 %v1975, 1.442695
        %v2003 = vpow.pop %v2002
        %v2004 = vmul.f32 %v1976, 1.442695
        %v2005 = vpow.pop %v2004
        %v2006 = vmul.f32 %v1977, 1.442695
        %v2007 = vpow.pop %v2006
        %v2008 = vmul.f32 %v1978, 1.442695
        %v2009 = vpow.pop %v2008
        %v2010 = vmul.f32 %v1979, 1.442695
        %v2011 = vpow.pop %v2010
        %2013 = vset.pattern.permute.xlu0 0
        %2014 = vperm.xlu0 %2013, %v1948
        %v2015 = vpop.permute.xlu0 %2014
        %2018 = vset.pattern.permute.xlu0 0
        %2019 = vperm.xlu0 %2018, %v1949
        %v2020 = vpop.permute.xlu0 %2019
        %2023 = vset.pattern.permute.xlu0 0
        %2024 = vperm.xlu0 %2023, %v1950
        %v2025 = vpop.permute.xlu0 %2024
        %2028 = vset.pattern.permute.xlu0 0
        %2029 = vperm.xlu0 %2028, %v1951
        %v2030 = vpop.permute.xlu0 %2029
        %2033 = vset.pattern.permute.xlu0 0
        %2034 = vperm.xlu0 %2033, %v1952
        %v2035 = vpop.permute.xlu0 %2034
        %2038 = vset.pattern.permute.xlu0 0
        %2039 = vperm.xlu0 %2038, %v1953
        %v2040 = vpop.permute.xlu0 %2039
        %2043 = vset.pattern.permute.xlu0 0
        %2044 = vperm.xlu0 %2043, %v1954
        %v2045 = vpop.permute.xlu0 %2044
        %2048 = vset.pattern.permute.xlu0 0
        %2049 = vperm.xlu0 %2048, %v1955
        %v2050 = vpop.permute.xlu0 %2049
        %2053 = vset.pattern.permute.xlu0 0
        %2054 = vperm.xlu0 %2053, %v1956
        %v2055 = vpop.permute.xlu0 %2054
        %2058 = vset.pattern.permute.xlu0 0
        %2059 = vperm.xlu0 %2058, %v1957
        %v2060 = vpop.permute.xlu0 %2059
        %2063 = vset.pattern.permute.xlu0 0
        %2064 = vperm.xlu0 %2063, %v1958
        %v2065 = vpop.permute.xlu0 %2064
        %2068 = vset.pattern.permute.xlu0 0
        %2069 = vperm.xlu0 %2068, %v1959
        %v2070 = vpop.permute.xlu0 %2069
        %2073 = vset.pattern.permute.xlu0 0
        %2074 = vperm.xlu0 %2073, %v1960
        %v2075 = vpop.permute.xlu0 %2074
        %2078 = vset.pattern.permute.xlu0 0
        %2079 = vperm.xlu0 %2078, %v1961
        %v2080 = vpop.permute.xlu0 %2079
        %2083 = vset.pattern.permute.xlu0 0
        %2084 = vperm.xlu0 %2083, %v1962
        %v2085 = vpop.permute.xlu0 %2084
        %2088 = vset.pattern.permute.xlu0 0
        %2089 = vperm.xlu0 %2088, %v1963
        %v2090 = vpop.permute.xlu0 %2089
        %v2092 = vsub.f32 %v1861, %v2015
        %v2093 = vsub.f32 %v1863, %v2020
        %v2094 = vsub.f32 %v1866, %v2025
        %v2095 = vsub.f32 %v1868, %v2030
        %v2096 = vsub.f32 %v1871, %v2035
        %v2097 = vsub.f32 %v1873, %v2040
        %v2098 = vsub.f32 %v1876, %v2045
        %v2099 = vsub.f32 %v1878, %v2050
        %v2100 = vsub.f32 %v1881, %v2055
        %v2101 = vsub.f32 %v1883, %v2060
        %v2102 = vsub.f32 %v1886, %v2065
        %v2103 = vsub.f32 %v1888, %v2070
        %v2104 = vsub.f32 %v1891, %v2075
        %v2105 = vsub.f32 %v1893, %v2080
        %v2106 = vsub.f32 %v1896, %v2085
        %v2107 = vsub.f32 %v1898, %v2090
        %v2108 = vmul.f32 %v2092, 1.442695
        %v2109 = vpow.pop %v2108
        %v2110 = vmul.f32 %v2093, 1.442695
        %v2111 = vpow.pop %v2110
        %v2112 = vmul.f32 %v2094, 1.442695
        %v2113 = vpow.pop %v2112
        %v2114 = vmul.f32 %v2095, 1.442695
        %v2115 = vpow.pop %v2114
        %v2116 = vmul.f32 %v2096, 1.442695
        %v2117 = vpow.pop %v2116
        %v2118 = vmul.f32 %v2097, 1.442695
        %v2119 = vpow.pop %v2118
        %v2120 = vmul.f32 %v2098, 1.442695
        %v2121 = vpow.pop %v2120
        %v2122 = vmul.f32 %v2099, 1.442695
        %v2123 = vpow.pop %v2122
        %v2124 = vmul.f32 %v2100, 1.442695
        %v2125 = vpow.pop %v2124
        %v2126 = vmul.f32 %v2101, 1.442695
        %v2127 = vpow.pop %v2126
        %v2128 = vmul.f32 %v2102, 1.442695
        %v2129 = vpow.pop %v2128
        %v2130 = vmul.f32 %v2103, 1.442695
        %v2131 = vpow.pop %v2130
        %v2132 = vmul.f32 %v2104, 1.442695
        %v2133 = vpow.pop %v2132
        %v2134 = vmul.f32 %v2105, 1.442695
        %v2135 = vpow.pop %v2134
        %v2136 = vmul.f32 %v2106, 1.442695
        %v2137 = vpow.pop %v2136
        %v2138 = vmul.f32 %v2107, 1.442695
        %v2139 = vpow.pop %v2138
        %v2140 = vld [vmem:[#allocation4] sm:$0xff]
        %v2141 = vld [vmem:[#allocation4 + $0x8] sm:$0xff]
        %v2142 = vld [vmem:[#allocation4 + $0x10] sm:$0xff]
        %v2143 = vld [vmem:[#allocation4 + $0x18] sm:$0xff]
        %v2144 = vld [vmem:[#allocation4 + $0x20] sm:$0xff]
        %v2145 = vld [vmem:[#allocation4 + $0x28] sm:$0xff]
        %v2146 = vld [vmem:[#allocation4 + $0x30] sm:$0xff]
        %v2147 = vld [vmem:[#allocation4 + $0x38] sm:$0xff]
        %v2148 = vld [vmem:[#allocation4 + $0x40] sm:$0xff]
        %v2149 = vld [vmem:[#allocation4 + $0x48] sm:$0xff]
        %v2150 = vld [vmem:[#allocation4 + $0x50] sm:$0xff]
        %v2151 = vld [vmem:[#allocation4 + $0x58] sm:$0xff]
        %v2152 = vld [vmem:[#allocation4 + $0x60] sm:$0xff]
        %v2153 = vld [vmem:[#allocation4 + $0x68] sm:$0xff]
        %v2154 = vld [vmem:[#allocation4 + $0x70] sm:$0xff]
        %v2155 = vld [vmem:[#allocation4 + $0x78] sm:$0xff]
        %v2156 = vmul.f32 %v1981, %v2140
        %v2157 = vmul.f32 %v1983, %v2141
        %v2158 = vmul.f32 %v1985, %v2142
        %v2159 = vmul.f32 %v1987, %v2143
        %v2160 = vmul.f32 %v1989, %v2144
        %v2161 = vmul.f32 %v1991, %v2145
        %v2162 = vmul.f32 %v1993, %v2146
        %v2163 = vmul.f32 %v1995, %v2147
        %v2164 = vmul.f32 %v1997, %v2148
        %v2165 = vmul.f32 %v1999, %v2149
        %v2166 = vmul.f32 %v2001, %v2150
        %v2167 = vmul.f32 %v2003, %v2151
        %v2168 = vmul.f32 %v2005, %v2152
        %v2169 = vmul.f32 %v2007, %v2153
        %v2170 = vmul.f32 %v2009, %v2154
        %v2171 = vmul.f32 %v2011, %v2155
        %2172 = vadd.xlane.f32.xlu0 %v2109
        %v2173 = vpop.xlane.xlu0 %2172
        %2174 = vadd.xlane.f32.xlu0 %v2111
        %v2175 = vpop.xlane.xlu0 %2174
        %2176 = vadd.xlane.f32.xlu0 %v2113
        %v2177 = vpop.xlane.xlu0 %2176
        %2178 = vadd.xlane.f32.xlu0 %v2115
        %v2179 = vpop.xlane.xlu0 %2178
        %2180 = vadd.xlane.f32.xlu0 %v2117
        %v2181 = vpop.xlane.xlu0 %2180
        %2182 = vadd.xlane.f32.xlu0 %v2119
        %v2183 = vpop.xlane.xlu0 %2182
        %2184 = vadd.xlane.f32.xlu0 %v2121
        %v2185 = vpop.xlane.xlu0 %2184
        %2186 = vadd.xlane.f32.xlu0 %v2123
        %v2187 = vpop.xlane.xlu0 %2186
        %2188 = vadd.xlane.f32.xlu0 %v2125
        %v2189 = vpop.xlane.xlu0 %2188
        %2190 = vadd.xlane.f32.xlu0 %v2127
        %v2191 = vpop.xlane.xlu0 %2190
        %2192 = vadd.xlane.f32.xlu0 %v2129
        %v2193 = vpop.xlane.xlu0 %2192
        %2194 = vadd.xlane.f32.xlu0 %v2131
        %v2195 = vpop.xlane.xlu0 %2194
        %2196 = vadd.xlane.f32.xlu0 %v2133
        %v2197 = vpop.xlane.xlu0 %2196
        %2198 = vadd.xlane.f32.xlu0 %v2135
        %v2199 = vpop.xlane.xlu0 %2198
        %2200 = vadd.xlane.f32.xlu0 %v2137
        %v2201 = vpop.xlane.xlu0 %2200
        %2202 = vadd.xlane.f32.xlu0 %v2139
        %v2203 = vpop.xlane.xlu0 %2202
        %v2204 = vadd.f32 %v2156, %v2173
        %v2205 = vadd.f32 %v2157, %v2175
        %v2206 = vadd.f32 %v2158, %v2177
        %v2207 = vadd.f32 %v2159, %v2179
        %v2208 = vadd.f32 %v2160, %v2181
        %v2209 = vadd.f32 %v2161, %v2183
        %v2210 = vadd.f32 %v2162, %v2185
        %v2211 = vadd.f32 %v2163, %v2187
        %v2212 = vadd.f32 %v2164, %v2189
        %v2213 = vadd.f32 %v2165, %v2191
        %v2214 = vadd.f32 %v2166, %v2193
        %v2215 = vadd.f32 %v2167, %v2195
        %v2216 = vadd.f32 %v2168, %v2197
        %v2217 = vadd.f32 %v2169, %v2199
        %v2218 = vadd.f32 %v2170, %v2201
        %v2219 = vadd.f32 %v2171, %v2203
        %vm2220 = vcmask 7168
        %2221 = vst.msk [vmem:[#allocation4] sm:$0xff] %vm2220, %v2204
        %2222 = vst.msk [vmem:[#allocation4 + $0x8] sm:$0xff] %vm2220, %v2205
        %2223 = vst.msk [vmem:[#allocation4 + $0x10] sm:$0xff] %vm2220, %v2206
        %2224 = vst.msk [vmem:[#allocation4 + $0x18] sm:$0xff] %vm2220, %v2207
        %2225 = vst.msk [vmem:[#allocation4 + $0x20] sm:$0xff] %vm2220, %v2208
        %2226 = vst.msk [vmem:[#allocation4 + $0x28] sm:$0xff] %vm2220, %v2209
        %2227 = vst.msk [vmem:[#allocation4 + $0x30] sm:$0xff] %vm2220, %v2210
        %2228 = vst.msk [vmem:[#allocation4 + $0x38] sm:$0xff] %vm2220, %v2211
        %2229 = vst.msk [vmem:[#allocation4 + $0x40] sm:$0xff] %vm2220, %v2212
        %2230 = vst.msk [vmem:[#allocation4 + $0x48] sm:$0xff] %vm2220, %v2213
        %2231 = vst.msk [vmem:[#allocation4 + $0x50] sm:$0xff] %vm2220, %v2214
        %2232 = vst.msk [vmem:[#allocation4 + $0x58] sm:$0xff] %vm2220, %v2215
        %2233 = vst.msk [vmem:[#allocation4 + $0x60] sm:$0xff] %vm2220, %v2216
        %2234 = vst.msk [vmem:[#allocation4 + $0x68] sm:$0xff] %vm2220, %v2217
        %2235 = vst.msk [vmem:[#allocation4 + $0x70] sm:$0xff] %vm2220, %v2218
        %2236 = vst.msk [vmem:[#allocation4 + $0x78] sm:$0xff] %vm2220, %v2219
        %2237 = vst.msk [vmem:[#allocation3] sm:$0xff] %vm2220, %v1948
        %2238 = vst.msk [vmem:[#allocation3 + $0x8] sm:$0xff] %vm2220, %v1949
        %2239 = vst.msk [vmem:[#allocation3 + $0x10] sm:$0xff] %vm2220, %v1950
        %2240 = vst.msk [vmem:[#allocation3 + $0x18] sm:$0xff] %vm2220, %v1951
        %2241 = vst.msk [vmem:[#allocation3 + $0x20] sm:$0xff] %vm2220, %v1952
        %2242 = vst.msk [vmem:[#allocation3 + $0x28] sm:$0xff] %vm2220, %v1953
        %2243 = vst.msk [vmem:[#allocation3 + $0x30] sm:$0xff] %vm2220, %v1954
        %2244 = vst.msk [vmem:[#allocation3 + $0x38] sm:$0xff] %vm2220, %v1955
        %2245 = vst.msk [vmem:[#allocation3 + $0x40] sm:$0xff] %vm2220, %v1956
        %2246 = vst.msk [vmem:[#allocation3 + $0x48] sm:$0xff] %vm2220, %v1957
        %2247 = vst.msk [vmem:[#allocation3 + $0x50] sm:$0xff] %vm2220, %v1958
        %2248 = vst.msk [vmem:[#allocation3 + $0x58] sm:$0xff] %vm2220, %v1959
        %2249 = vst.msk [vmem:[#allocation3 + $0x60] sm:$0xff] %vm2220, %v1960
        %2250 = vst.msk [vmem:[#allocation3 + $0x68] sm:$0xff] %vm2220, %v1961
        %2251 = vst.msk [vmem:[#allocation3 + $0x70] sm:$0xff] %vm2220, %v1962
        %2252 = vst.msk [vmem:[#allocation3 + $0x78] sm:$0xff] %vm2220, %v1963
        %v2253 = vpack.c.bf16 %v2111, %v2109
        %v2254 = vpack.c.bf16 %v2115, %v2113
        %v2255 = vpack.c.bf16 %v2119, %v2117
        %v2256 = vpack.c.bf16 %v2123, %v2121
        %v2257 = vpack.c.bf16 %v2127, %v2125
        %v2258 = vpack.c.bf16 %v2131, %v2129
        %v2259 = vpack.c.bf16 %v2135, %v2133
        %v2260 = vpack.c.bf16 %v2139, %v2137
        %v2261 = vpack.c.bf16 %v1555, %v1553
        %v2262 = vpack.c.bf16 %v1653, %v1651
        %v2263 = vpack.c.bf16 %v1560, %v1558
        %v2264 = vpack.c.bf16 %v1658, %v1656
        %v2265 = vpack.c.bf16 %v1565, %v1563
        %v2266 = vpack.c.bf16 %v1663, %v1661
        %v2267 = vpack.c.bf16 %v1570, %v1568
        %v2268 = vpack.c.bf16 %v1668, %v1666
        %v2269 = vpack.c.bf16 %v1575, %v1573
        %v2270 = vpack.c.bf16 %v1673, %v1671
        %v2271 = vpack.c.bf16 %v1580, %v1578
        %v2272 = vpack.c.bf16 %v1678, %v1676
        %v2273 = vpack.c.bf16 %v1585, %v1583
        %v2274 = vpack.c.bf16 %v1683, %v1681
        %v2275 = vpack.c.bf16 %v1590, %v1588
        %v2276 = vpack.c.bf16 %v1688, %v1686
        %2277 = vmatpush.bf16.msra.mxu0 %v2275
        %2278 = vmatpush.bf16.msra.mxu0 %v2273
        %2279 = vmatpush.bf16.msra.mxu0 %v2271
        %2280 = vmatpush.bf16.msra.mxu0 %v2269
        %2281 = vmatpush.bf16.msra.mxu0 %v2267
        %2282 = vmatpush.bf16.msra.mxu0 %v2265
        %2283 = vmatpush.bf16.msra.mxu0 %v2263
        %2284 = vmatpush.bf16.msra.mxu0 %v2261
        %2285 = vmatmul.bf16.gmra.mxu0 %v2253
        %v2286 = vpop.f32.mrf.mxu0
        %v2287 = vadd.f32 0.0, %v2286
        %v2288 = vpop.f32.mrf.mxu0
        %v2289 = vadd.f32 0.0, %v2288
        %2290 = vmatmul.bf16.gmra.mxu0 %v2254
        %v2291 = vpop.f32.mrf.mxu0
        %v2292 = vadd.f32 0.0, %v2291
        %v2293 = vpop.f32.mrf.mxu0
        %v2294 = vadd.f32 0.0, %v2293
        %2295 = vmatmul.bf16.gmra.mxu0 %v2255
        %v2296 = vpop.f32.mrf.mxu0
        %v2297 = vadd.f32 0.0, %v2296
        %v2298 = vpop.f32.mrf.mxu0
        %v2299 = vadd.f32 0.0, %v2298
        %2300 = vmatmul.bf16.gmra.mxu0 %v2256
        %v2301 = vpop.f32.mrf.mxu0
        %v2302 = vadd.f32 0.0, %v2301
        %v2303 = vpop.f32.mrf.mxu0
        %v2304 = vadd.f32 0.0, %v2303
        %2305 = vmatmul.bf16.gmra.mxu0 %v2257
        %v2306 = vpop.f32.mrf.mxu0
        %v2307 = vadd.f32 0.0, %v2306
        %v2308 = vpop.f32.mrf.mxu0
        %v2309 = vadd.f32 0.0, %v2308
        %2310 = vmatmul.bf16.gmra.mxu0 %v2258
        %v2311 = vpop.f32.mrf.mxu0
        %v2312 = vadd.f32 0.0, %v2311
        %v2313 = vpop.f32.mrf.mxu0
        %v2314 = vadd.f32 0.0, %v2313
        %2315 = vmatmul.bf16.gmra.mxu0 %v2259
        %v2316 = vpop.f32.mrf.mxu0
        %v2317 = vadd.f32 0.0, %v2316
        %v2318 = vpop.f32.mrf.mxu0
        %v2319 = vadd.f32 0.0, %v2318
        %2320 = vmatmul.bf16.gmra.mxu0 %v2260
        %v2321 = vpop.f32.mrf.mxu0
        %v2322 = vadd.f32 0.0, %v2321
        %v2323 = vpop.f32.mrf.mxu0
        %v2324 = vadd.f32 0.0, %v2323
        %2325 = vdwg.mxu0
        %2326 = vmatpush.bf16.msra.mxu0 %v2276
        %2327 = vmatpush.bf16.msra.mxu0 %v2274
        %2328 = vmatpush.bf16.msra.mxu0 %v2272
        %2329 = vmatpush.bf16.msra.mxu0 %v2270
        %2330 = vmatpush.bf16.msra.mxu0 %v2268
        %2331 = vmatpush.bf16.msra.mxu0 %v2266
        %2332 = vmatpush.bf16.msra.mxu0 %v2264
        %2333 = vmatpush.bf16.msra.mxu0 %v2262
        %2334 = vmatmul.bf16.gmra.mxu0 %v2253
        %v2335 = vpop.f32.mrf.mxu0
        %v2336 = vadd.f32 0.0, %v2335
        %v2337 = vpop.f32.mrf.mxu0
        %v2338 = vadd.f32 0.0, %v2337
        %2339 = vmatmul.bf16.gmra.mxu0 %v2254
        %v2340 = vpop.f32.mrf.mxu0
        %v2341 = vadd.f32 0.0, %v2340
        %v2342 = vpop.f32.mrf.mxu0
        %v2343 = vadd.f32 0.0, %v2342
        %2344 = vmatmul.bf16.gmra.mxu0 %v2255
        %v2345 = vpop.f32.mrf.mxu0
        %v2346 = vadd.f32 0.0, %v2345
        %v2347 = vpop.f32.mrf.mxu0
        %v2348 = vadd.f32 0.0, %v2347
        %2349 = vmatmul.bf16.gmra.mxu0 %v2256
        %v2350 = vpop.f32.mrf.mxu0
        %v2351 = vadd.f32 0.0, %v2350
        %v2352 = vpop.f32.mrf.mxu0
        %v2353 = vadd.f32 0.0, %v2352
        %2354 = vmatmul.bf16.gmra.mxu0 %v2257
        %v2355 = vpop.f32.mrf.mxu0
        %v2356 = vadd.f32 0.0, %v2355
        %v2357 = vpop.f32.mrf.mxu0
        %v2358 = vadd.f32 0.0, %v2357
        %2359 = vmatmul.bf16.gmra.mxu0 %v2258
        %v2360 = vpop.f32.mrf.mxu0
        %v2361 = vadd.f32 0.0, %v2360
        %v2362 = vpop.f32.mrf.mxu0
        %v2363 = vadd.f32 0.0, %v2362
        %2364 = vmatmul.bf16.gmra.mxu0 %v2259
        %v2365 = vpop.f32.mrf.mxu0
        %v2366 = vadd.f32 0.0, %v2365
        %v2367 = vpop.f32.mrf.mxu0
        %v2368 = vadd.f32 0.0, %v2367
        %2369 = vmatmul.bf16.gmra.mxu0 %v2260
        %v2370 = vpop.f32.mrf.mxu0
        %v2371 = vadd.f32 0.0, %v2370
        %v2372 = vpop.f32.mrf.mxu0
        %v2373 = vadd.f32 0.0, %v2372
        %2374 = vdwg.mxu0
        %v2375 = vld [vmem:[#allocation5] sm:$0xff]
        %v2376 = vld [vmem:[#allocation5 + $0x8] sm:$0xff]
        %v2377 = vld [vmem:[#allocation5 + $0x10] sm:$0xff]
        %v2378 = vld [vmem:[#allocation5 + $0x18] sm:$0xff]
        %v2379 = vld [vmem:[#allocation5 + $0x20] sm:$0xff]
        %v2380 = vld [vmem:[#allocation5 + $0x28] sm:$0xff]
        %v2381 = vld [vmem:[#allocation5 + $0x30] sm:$0xff]
        %v2382 = vld [vmem:[#allocation5 + $0x38] sm:$0xff]
        %v2383 = vld [vmem:[#allocation5 + $0x40] sm:$0xff]
        %v2384 = vld [vmem:[#allocation5 + $0x48] sm:$0xff]
        %v2385 = vld [vmem:[#allocation5 + $0x50] sm:$0xff]
        %v2386 = vld [vmem:[#allocation5 + $0x58] sm:$0xff]
        %v2387 = vld [vmem:[#allocation5 + $0x60] sm:$0xff]
        %v2388 = vld [vmem:[#allocation5 + $0x68] sm:$0xff]
        %v2389 = vld [vmem:[#allocation5 + $0x70] sm:$0xff]
        %v2390 = vld [vmem:[#allocation5 + $0x78] sm:$0xff]
        %v2391 = vld [vmem:[#allocation5 + $0x80] sm:$0xff]
        %v2392 = vld [vmem:[#allocation5 + $0x88] sm:$0xff]
        %v2393 = vld [vmem:[#allocation5 + $0x90] sm:$0xff]
        %v2394 = vld [vmem:[#allocation5 + $0x98] sm:$0xff]
        %v2395 = vld [vmem:[#allocation5 + $0xa0] sm:$0xff]
        %v2396 = vld [vmem:[#allocation5 + $0xa8] sm:$0xff]
        %v2397 = vld [vmem:[#allocation5 + $0xb0] sm:$0xff]
        %v2398 = vld [vmem:[#allocation5 + $0xb8] sm:$0xff]
        %v2399 = vld [vmem:[#allocation5 + $0xc0] sm:$0xff]
        %v2400 = vld [vmem:[#allocation5 + $0xc8] sm:$0xff]
        %v2401 = vld [vmem:[#allocation5 + $0xd0] sm:$0xff]
        %v2402 = vld [vmem:[#allocation5 + $0xd8] sm:$0xff]
        %v2403 = vld [vmem:[#allocation5 + $0xe0] sm:$0xff]
        %v2404 = vld [vmem:[#allocation5 + $0xe8] sm:$0xff]
        %v2405 = vld [vmem:[#allocation5 + $0xf0] sm:$0xff]
        %v2406 = vld [vmem:[#allocation5 + $0xf8] sm:$0xff]
        %2408 = vset.pattern.permute.xlu0 0
        %2409 = vperm.xlu0 %2408, %v1981
        %v2410 = vpop.permute.xlu0 %2409
        %2413 = vset.pattern.permute.xlu0 0
        %2414 = vperm.xlu0 %2413, %v1983
        %v2415 = vpop.permute.xlu0 %2414
        %2418 = vset.pattern.permute.xlu0 0
        %2419 = vperm.xlu0 %2418, %v1985
        %v2420 = vpop.permute.xlu0 %2419
        %2423 = vset.pattern.permute.xlu0 0
        %2424 = vperm.xlu0 %2423, %v1987
        %v2425 = vpop.permute.xlu0 %2424
        %2428 = vset.pattern.permute.xlu0 0
        %2429 = vperm.xlu0 %2428, %v1989
        %v2430 = vpop.permute.xlu0 %2429
        %2433 = vset.pattern.permute.xlu0 0
        %2434 = vperm.xlu0 %2433, %v1991
        %v2435 = vpop.permute.xlu0 %2434
        %2438 = vset.pattern.permute.xlu0 0
        %2439 = vperm.xlu0 %2438, %v1993
        %v2440 = vpop.permute.xlu0 %2439
        %2443 = vset.pattern.permute.xlu0 0
        %2444 = vperm.xlu0 %2443, %v1995
        %v2445 = vpop.permute.xlu0 %2444
        %2448 = vset.pattern.permute.xlu0 0
        %2449 = vperm.xlu0 %2448, %v1997
        %v2450 = vpop.permute.xlu0 %2449
        %2453 = vset.pattern.permute.xlu0 0
        %2454 = vperm.xlu0 %2453, %v1999
        %v2455 = vpop.permute.xlu0 %2454
        %2458 = vset.pattern.permute.xlu0 0
        %2459 = vperm.xlu0 %2458, %v2001
        %v2460 = vpop.permute.xlu0 %2459
        %2463 = vset.pattern.permute.xlu0 0
        %2464 = vperm.xlu0 %2463, %v2003
        %v2465 = vpop.permute.xlu0 %2464
        %2468 = vset.pattern.permute.xlu0 0
        %2469 = vperm.xlu0 %2468, %v2005
        %v2470 = vpop.permute.xlu0 %2469
        %2473 = vset.pattern.permute.xlu0 0
        %2474 = vperm.xlu0 %2473, %v2007
        %v2475 = vpop.permute.xlu0 %2474
        %2478 = vset.pattern.permute.xlu0 0
        %2479 = vperm.xlu0 %2478, %v2009
        %v2480 = vpop.permute.xlu0 %2479
        %2483 = vset.pattern.permute.xlu0 0
        %2484 = vperm.xlu0 %2483, %v2011
        %v2485 = vpop.permute.xlu0 %2484
        %v2487 = vmul.f32 %v2410, %v2375
        %v2488 = vmul.f32 %v2410, %v2376
        %v2489 = vmul.f32 %v2415, %v2377
        %v2490 = vmul.f32 %v2415, %v2378
        %v2491 = vmul.f32 %v2420, %v2379
        %v2492 = vmul.f32 %v2420, %v2380
        %v2493 = vmul.f32 %v2425, %v2381
        %v2494 = vmul.f32 %v2425, %v2382
        %v2495 = vmul.f32 %v2430, %v2383
        %v2496 = vmul.f32 %v2430, %v2384
        %v2497 = vmul.f32 %v2435, %v2385
        %v2498 = vmul.f32 %v2435, %v2386
        %v2499 = vmul.f32 %v2440, %v2387
        %v2500 = vmul.f32 %v2440, %v2388
        %v2501 = vmul.f32 %v2445, %v2389
        %v2502 = vmul.f32 %v2445, %v2390
        %v2503 = vmul.f32 %v2450, %v2391
        %v2504 = vmul.f32 %v2450, %v2392
        %v2505 = vmul.f32 %v2455, %v2393
        %v2506 = vmul.f32 %v2455, %v2394
        %v2507 = vmul.f32 %v2460, %v2395
        %v2508 = vmul.f32 %v2460, %v2396
        %v2509 = vmul.f32 %v2465, %v2397
        %v2510 = vmul.f32 %v2465, %v2398
        %v2511 = vmul.f32 %v2470, %v2399
        %v2512 = vmul.f32 %v2470, %v2400
        %v2513 = vmul.f32 %v2475, %v2401
        %v2514 = vmul.f32 %v2475, %v2402
        %v2515 = vmul.f32 %v2480, %v2403
        %v2516 = vmul.f32 %v2480, %v2404
        %v2517 = vmul.f32 %v2485, %v2405
        %v2518 = vmul.f32 %v2485, %v2406
        %v2519 = vadd.f32 %v2487, %v2287
        %v2520 = vadd.f32 %v2488, %v2336
        %v2521 = vadd.f32 %v2489, %v2289
        %v2522 = vadd.f32 %v2490, %v2338
        %v2523 = vadd.f32 %v2491, %v2292
        %v2524 = vadd.f32 %v2492, %v2341
        %v2525 = vadd.f32 %v2493, %v2294
        %v2526 = vadd.f32 %v2494, %v2343
        %v2527 = vadd.f32 %v2495, %v2297
        %v2528 = vadd.f32 %v2496, %v2346
        %v2529 = vadd.f32 %v2497, %v2299
        %v2530 = vadd.f32 %v2498, %v2348
        %v2531 = vadd.f32 %v2499, %v2302
        %v2532 = vadd.f32 %v2500, %v2351
        %v2533 = vadd.f32 %v2501, %v2304
        %v2534 = vadd.f32 %v2502, %v2353
        %v2535 = vadd.f32 %v2503, %v2307
        %v2536 = vadd.f32 %v2504, %v2356
        %v2537 = vadd.f32 %v2505, %v2309
        %v2538 = vadd.f32 %v2506, %v2358
        %v2539 = vadd.f32 %v2507, %v2312
        %v2540 = vadd.f32 %v2508, %v2361
        %v2541 = vadd.f32 %v2509, %v2314
        %v2542 = vadd.f32 %v2510, %v2363
        %v2543 = vadd.f32 %v2511, %v2317
        %v2544 = vadd.f32 %v2512, %v2366
        %v2545 = vadd.f32 %v2513, %v2319
        %v2546 = vadd.f32 %v2514, %v2368
        %v2547 = vadd.f32 %v2515, %v2322
        %v2548 = vadd.f32 %v2516, %v2371
        %v2549 = vadd.f32 %v2517, %v2324
        %v2550 = vadd.f32 %v2518, %v2373
        %2551 = vst [vmem:[#allocation5] sm:$0xff] %v2519
        %2552 = vst [vmem:[#allocation5 + $0x8] sm:$0xff] %v2520
        %2553 = vst [vmem:[#allocation5 + $0x10] sm:$0xff] %v2521
        %2554 = vst [vmem:[#allocation5 + $0x18] sm:$0xff] %v2522
        %2555 = vst [vmem:[#allocation5 + $0x20] sm:$0xff] %v2523
        %2556 = vst [vmem:[#allocation5 + $0x28] sm:$0xff] %v2524
        %2557 = vst [vmem:[#allocation5 + $0x30] sm:$0xff] %v2525
        %2558 = vst [vmem:[#allocation5 + $0x38] sm:$0xff] %v2526
        %2559 = vst [vmem:[#allocation5 + $0x40] sm:$0xff] %v2527
        %2560 = vst [vmem:[#allocation5 + $0x48] sm:$0xff] %v2528
        %2561 = vst [vmem:[#allocation5 + $0x50] sm:$0xff] %v2529
        %2562 = vst [vmem:[#allocation5 + $0x58] sm:$0xff] %v2530
        %2563 = vst [vmem:[#allocation5 + $0x60] sm:$0xff] %v2531
        %2564 = vst [vmem:[#allocation5 + $0x68] sm:$0xff] %v2532
        %2565 = vst [vmem:[#allocation5 + $0x70] sm:$0xff] %v2533
        %2566 = vst [vmem:[#allocation5 + $0x78] sm:$0xff] %v2534
        %2567 = vst [vmem:[#allocation5 + $0x80] sm:$0xff] %v2535
        %2568 = vst [vmem:[#allocation5 + $0x88] sm:$0xff] %v2536
        %2569 = vst [vmem:[#allocation5 + $0x90] sm:$0xff] %v2537
        %2570 = vst [vmem:[#allocation5 + $0x98] sm:$0xff] %v2538
        %2571 = vst [vmem:[#allocation5 + $0xa0] sm:$0xff] %v2539
        %2572 = vst [vmem:[#allocation5 + $0xa8] sm:$0xff] %v2540
        %2573 = vst [vmem:[#allocation5 + $0xb0] sm:$0xff] %v2541
        %2574 = vst [vmem:[#allocation5 + $0xb8] sm:$0xff] %v2542
        %2575 = vst [vmem:[#allocation5 + $0xc0] sm:$0xff] %v2543
        %2576 = vst [vmem:[#allocation5 + $0xc8] sm:$0xff] %v2544
        %2577 = vst [vmem:[#allocation5 + $0xd0] sm:$0xff] %v2545
        %2578 = vst [vmem:[#allocation5 + $0xd8] sm:$0xff] %v2546
        %2579 = vst [vmem:[#allocation5 + $0xe0] sm:$0xff] %v2547
        %2580 = vst [vmem:[#allocation5 + $0xe8] sm:$0xff] %v2548
        %2581 = vst [vmem:[#allocation5 + $0xf0] sm:$0xff] %v2549
        %2582 = vst [vmem:[#allocation5 + $0xf8] sm:$0xff] %v2550
        %p2583 = scmp.eq.s32.totalorder %s32, 1
        // Predicated region
        $region57: #{tpu_custom_call.1} parent=35 // pred_check
          %p2584 = pneg %p2583
        $region58: #{tpu_custom_call.1} parent=35 // pred_check_branch
          %2586 = sbr.rel (%p2584) target = $region60
        $region59: #{tpu_custom_call.1} parent=35 // pred_region
          %v2587 = vld [vmem:[#allocation4] sm:$0xff]
          %v2588 = vld [vmem:[#allocation4 + $0x8] sm:$0xff]
          %v2589 = vld [vmem:[#allocation4 + $0x10] sm:$0xff]
          %v2590 = vld [vmem:[#allocation4 + $0x18] sm:$0xff]
          %v2591 = vld [vmem:[#allocation4 + $0x20] sm:$0xff]
          %v2592 = vld [vmem:[#allocation4 + $0x28] sm:$0xff]
          %v2593 = vld [vmem:[#allocation4 + $0x30] sm:$0xff]
          %v2594 = vld [vmem:[#allocation4 + $0x38] sm:$0xff]
          %v2595 = vld [vmem:[#allocation4 + $0x40] sm:$0xff]
          %v2596 = vld [vmem:[#allocation4 + $0x48] sm:$0xff]
          %v2597 = vld [vmem:[#allocation4 + $0x50] sm:$0xff]
          %v2598 = vld [vmem:[#allocation4 + $0x58] sm:$0xff]
          %v2599 = vld [vmem:[#allocation4 + $0x60] sm:$0xff]
          %v2600 = vld [vmem:[#allocation4 + $0x68] sm:$0xff]
          %v2601 = vld [vmem:[#allocation4 + $0x70] sm:$0xff]
          %v2602 = vld [vmem:[#allocation4 + $0x78] sm:$0xff]
          %v2603 = vrcp.pop %v2587
          %v2604 = vrcp.pop %v2588
          %v2605 = vrcp.pop %v2589
          %v2606 = vrcp.pop %v2590
          %v2607 = vrcp.pop %v2591
          %v2608 = vrcp.pop %v2592
          %v2609 = vrcp.pop %v2593
          %v2610 = vrcp.pop %v2594
          %v2611 = vrcp.pop %v2595
          %v2612 = vrcp.pop %v2596
          %v2613 = vrcp.pop %v2597
          %v2614 = vrcp.pop %v2598
          %v2615 = vrcp.pop %v2599
          %v2616 = vrcp.pop %v2600
          %v2617 = vrcp.pop %v2601
          %v2618 = vrcp.pop %v2602
          %v2619 = vld [vmem:[#allocation5] sm:$0xff]
          %v2620 = vld [vmem:[#allocation5 + $0x8] sm:$0xff]
          %v2621 = vld [vmem:[#allocation5 + $0x10] sm:$0xff]
          %v2622 = vld [vmem:[#allocation5 + $0x18] sm:$0xff]
          %v2623 = vld [vmem:[#allocation5 + $0x20] sm:$0xff]
          %v2624 = vld [vmem:[#allocation5 + $0x28] sm:$0xff]
          %v2625 = vld [vmem:[#allocation5 + $0x30] sm:$0xff]
          %v2626 = vld [vmem:[#allocation5 + $0x38] sm:$0xff]
          %v2627 = vld [vmem:[#allocation5 + $0x40] sm:$0xff]
          %v2628 = vld [vmem:[#allocation5 + $0x48] sm:$0xff]
          %v2629 = vld [vmem:[#allocation5 + $0x50] sm:$0xff]
          %v2630 = vld [vmem:[#allocation5 + $0x58] sm:$0xff]
          %v2631 = vld [vmem:[#allocation5 + $0x60] sm:$0xff]
          %v2632 = vld [vmem:[#allocation5 + $0x68] sm:$0xff]
          %v2633 = vld [vmem:[#allocation5 + $0x70] sm:$0xff]
          %v2634 = vld [vmem:[#allocation5 + $0x78] sm:$0xff]
          %v2635 = vld [vmem:[#allocation5 + $0x80] sm:$0xff]
          %v2636 = vld [vmem:[#allocation5 + $0x88] sm:$0xff]
          %v2637 = vld [vmem:[#allocation5 + $0x90] sm:$0xff]
          %v2638 = vld [vmem:[#allocation5 + $0x98] sm:$0xff]
          %v2639 = vld [vmem:[#allocation5 + $0xa0] sm:$0xff]
          %v2640 = vld [vmem:[#allocation5 + $0xa8] sm:$0xff]
          %v2641 = vld [vmem:[#allocation5 + $0xb0] sm:$0xff]
          %v2642 = vld [vmem:[#allocation5 + $0xb8] sm:$0xff]
          %v2643 = vld [vmem:[#allocation5 + $0xc0] sm:$0xff]
          %v2644 = vld [vmem:[#allocation5 + $0xc8] sm:$0xff]
          %v2645 = vld [vmem:[#allocation5 + $0xd0] sm:$0xff]
          %v2646 = vld [vmem:[#allocation5 + $0xd8] sm:$0xff]
          %v2647 = vld [vmem:[#allocation5 + $0xe0] sm:$0xff]
          %v2648 = vld [vmem:[#allocation5 + $0xe8] sm:$0xff]
          %v2649 = vld [vmem:[#allocation5 + $0xf0] sm:$0xff]
          %v2650 = vld [vmem:[#allocation5 + $0xf8] sm:$0xff]
          %2652 = vset.pattern.permute.xlu0 0
          %2653 = vperm.xlu0 %2652, %v2603
          %v2654 = vpop.permute.xlu0 %2653
          %2657 = vset.pattern.permute.xlu0 0
          %2658 = vperm.xlu0 %2657, %v2604
          %v2659 = vpop.permute.xlu0 %2658
          %2662 = vset.pattern.permute.xlu0 0
          %2663 = vperm.xlu0 %2662, %v2605
          %v2664 = vpop.permute.xlu0 %2663
          %2667 = vset.pattern.permute.xlu0 0
          %2668 = vperm.xlu0 %2667, %v2606
          %v2669 = vpop.permute.xlu0 %2668
          %2672 = vset.pattern.permute.xlu0 0
          %2673 = vperm.xlu0 %2672, %v2607
          %v2674 = vpop.permute.xlu0 %2673
          %2677 = vset.pattern.permute.xlu0 0
          %2678 = vperm.xlu0 %2677, %v2608
          %v2679 = vpop.permute.xlu0 %2678
          %2682 = vset.pattern.permute.xlu0 0
          %2683 = vperm.xlu0 %2682, %v2609
          %v2684 = vpop.permute.xlu0 %2683
          %2687 = vset.pattern.permute.xlu0 0
          %2688 = vperm.xlu0 %2687, %v2610
          %v2689 = vpop.permute.xlu0 %2688
          %2692 = vset.pattern.permute.xlu0 0
          %2693 = vperm.xlu0 %2692, %v2611
          %v2694 = vpop.permute.xlu0 %2693
          %2697 = vset.pattern.permute.xlu0 0
          %2698 = vperm.xlu0 %2697, %v2612
          %v2699 = vpop.permute.xlu0 %2698
          %2702 = vset.pattern.permute.xlu0 0
          %2703 = vperm.xlu0 %2702, %v2613
          %v2704 = vpop.permute.xlu0 %2703
          %2707 = vset.pattern.permute.xlu0 0
          %2708 = vperm.xlu0 %2707, %v2614
          %v2709 = vpop.permute.xlu0 %2708
          %2712 = vset.pattern.permute.xlu0 0
          %2713 = vperm.xlu0 %2712, %v2615
          %v2714 = vpop.permute.xlu0 %2713
          %2717 = vset.pattern.permute.xlu0 0
          %2718 = vperm.xlu0 %2717, %v2616
          %v2719 = vpop.permute.xlu0 %2718
          %2722 = vset.pattern.permute.xlu0 0
          %2723 = vperm.xlu0 %2722, %v2617
          %v2724 = vpop.permute.xlu0 %2723
          %2727 = vset.pattern.permute.xlu0 0
          %2728 = vperm.xlu0 %2727, %v2618
          %v2729 = vpop.permute.xlu0 %2728
          %v2731 = vmul.f32 %v2619, %v2654
          %v2732 = vmul.f32 %v2620, %v2654
          %v2733 = vmul.f32 %v2621, %v2659
          %v2734 = vmul.f32 %v2622, %v2659
          %v2735 = vmul.f32 %v2623, %v2664
          %v2736 = vmul.f32 %v2624, %v2664
          %v2737 = vmul.f32 %v2625, %v2669
          %v2738 = vmul.f32 %v2626, %v2669
          %v2739 = vmul.f32 %v2627, %v2674
          %v2740 = vmul.f32 %v2628, %v2674
          %v2741 = vmul.f32 %v2629, %v2679
          %v2742 = vmul.f32 %v2630, %v2679
          %v2743 = vmul.f32 %v2631, %v2684
          %v2744 = vmul.f32 %v2632, %v2684
          %v2745 = vmul.f32 %v2633, %v2689
          %v2746 = vmul.f32 %v2634, %v2689
          %v2747 = vmul.f32 %v2635, %v2694
          %v2748 = vmul.f32 %v2636, %v2694
          %v2749 = vmul.f32 %v2637, %v2699
          %v2750 = vmul.f32 %v2638, %v2699
          %v2751 = vmul.f32 %v2639, %v2704
          %v2752 = vmul.f32 %v2640, %v2704
          %v2753 = vmul.f32 %v2641, %v2709
          %v2754 = vmul.f32 %v2642, %v2709
          %v2755 = vmul.f32 %v2643, %v2714
          %v2756 = vmul.f32 %v2644, %v2714
          %v2757 = vmul.f32 %v2645, %v2719
          %v2758 = vmul.f32 %v2646, %v2719
          %v2759 = vmul.f32 %v2647, %v2724
          %v2760 = vmul.f32 %v2648, %v2724
          %v2761 = vmul.f32 %v2649, %v2729
          %v2762 = vmul.f32 %v2650, %v2729
          %2763 = vst [vmem:[%s314] sm:$0xff] %v2731
          %2764 = vst [vmem:[%s314 + $0x8] sm:$0xff] %v2732
          %2765 = vst [vmem:[%s314 + $0x10] sm:$0xff] %v2733
          %2766 = vst [vmem:[%s314 + $0x18] sm:$0xff] %v2734
          %2767 = vst [vmem:[%s314 + $0x20] sm:$0xff] %v2735
          %2768 = vst [vmem:[%s314 + $0x28] sm:$0xff] %v2736
          %2769 = vst [vmem:[%s314 + $0x30] sm:$0xff] %v2737
          %2770 = vst [vmem:[%s314 + $0x38] sm:$0xff] %v2738
          %2771 = vst [vmem:[%s314 + $0x40] sm:$0xff] %v2739
          %2772 = vst [vmem:[%s314 + $0x48] sm:$0xff] %v2740
          %2773 = vst [vmem:[%s314 + $0x50] sm:$0xff] %v2741
          %2774 = vst [vmem:[%s314 + $0x58] sm:$0xff] %v2742
          %2775 = vst [vmem:[%s314 + $0x60] sm:$0xff] %v2743
          %2776 = vst [vmem:[%s314 + $0x68] sm:$0xff] %v2744
          %2777 = vst [vmem:[%s314 + $0x70] sm:$0xff] %v2745
          %2778 = vst [vmem:[%s314 + $0x78] sm:$0xff] %v2746
          %2779 = vst [vmem:[%s314 + $0x80] sm:$0xff] %v2747
          %2780 = vst [vmem:[%s314 + $0x88] sm:$0xff] %v2748
          %2781 = vst [vmem:[%s314 + $0x90] sm:$0xff] %v2749
          %2782 = vst [vmem:[%s314 + $0x98] sm:$0xff] %v2750
          %2783 = vst [vmem:[%s314 + $0xa0] sm:$0xff] %v2751
          %2784 = vst [vmem:[%s314 + $0xa8] sm:$0xff] %v2752
          %2785 = vst [vmem:[%s314 + $0xb0] sm:$0xff] %v2753
          %2786 = vst [vmem:[%s314 + $0xb8] sm:$0xff] %v2754
          %2787 = vst [vmem:[%s314 + $0xc0] sm:$0xff] %v2755
          %2788 = vst [vmem:[%s314 + $0xc8] sm:$0xff] %v2756
          %2789 = vst [vmem:[%s314 + $0xd0] sm:$0xff] %v2757
          %2790 = vst [vmem:[%s314 + $0xd8] sm:$0xff] %v2758
          %2791 = vst [vmem:[%s314 + $0xe0] sm:$0xff] %v2759
          %2792 = vst [vmem:[%s314 + $0xe8] sm:$0xff] %v2760
          %2793 = vst [vmem:[%s314 + $0xf0] sm:$0xff] %v2761
          %2794 = vst [vmem:[%s314 + $0xf8] sm:$0xff] %v2762
        $region60: #{tpu_custom_call.1} parent=35 // pred_fallthru
          _
        %s2795 = sand.u32 %s148, 1
        %s2796 = scalar_lea.sflag [#allocation8], %s2795
        %s2797 = sand.u32 %s148, 1
        %s2798 = smul.addr %s2797, 256
        %s2799 = scalar_lea.vmem [#allocation14], %s2798
        // Predicated region
        $region61: #{tpu_custom_call.1} parent=35 // pred_check
          %p2800 = pneg %p158
        $region62: #{tpu_custom_call.1} parent=35 // pred_check_branch
          %2802 = sbr.rel (%p2800) target = $region64
        $region63: #{tpu_custom_call.1} parent=35 // pred_region
          %s2803 = smul.u32 16, %s31
          %2805 = vsyncadd %s2796, 0
          %s2806 = smul.addr %s2803, 2
          %s2807 = smul.addr %s30, 64
          %s2808 = sadd.s32 %s2806, %s2807
          %s2809 = smul.addr %s2808, 8
          %s2810 = scalar_lea.hbm %s4, %s2809
          %s2811 = sshll.u32 %s2799, 4
          %s2812 = int_to_ptr.vmem [resolvable:$true] %s2811
          %s2813 = sshll.u32 %s2810, 4
          %s2814 = int_to_ptr.hbm [resolvable:$true] %s2813
          %2819 = dma.vmem_to_hbm [thread:$0]  %s2812, 4096, %s2814, %s2796, 256, 256, 16
        $region64: #{tpu_custom_call.1} parent=35 // pred_fallthru
          _
      $region36: #{tpu_custom_call.1} parent=5 // pred_fallthru
        _
      %p2820 = scmp.le.s32.totalorder 2, %s20
      // Predicated region
      $region65: #{tpu_custom_call.1} parent=5 // pred_check
        %p2821 = pneg %p2820
      $region66: #{tpu_custom_call.1} parent=5 // pred_check_branch
        %2823 = sbr.rel (%p2821) target = $region68
      $region67: #{tpu_custom_call.1} parent=5 // pred_region
        %s2824 = ssub.s32 %s20, 2
        // Predicated region
        $region69: #{tpu_custom_call.1} parent=67 // pred_check
          %p2825 = pneg %p164
        $region70: #{tpu_custom_call.1} parent=67 // pred_check_branch
          %2827 = sbr.rel (%p2825) target = $region72
        $region71: #{tpu_custom_call.1} parent=67 // pred_region
          %s2828 = sand.u32 %s149, 1
          %s2829 = scalar_lea.sflag [#allocation8], %s2828
          %s2830 = sand.u32 %s149, 1
          %s2831 = smul.addr %s2830, 256
          %s2832 = scalar_lea.vmem [#allocation14], %s2831
          %2834 = dma.done %s2829, 4096
        $region72: #{tpu_custom_call.1} parent=67 // pred_fallthru
          _
      $region68: #{tpu_custom_call.1} parent=5 // pred_fallthru
        _
    $region6: #{tpu_custom_call.1} parent=1 // loop_footer
      %s24 = sadd.s32 1, %s20
    $region7: #{tpu_custom_call.1} parent=1 // loop_footer_branch
      %19 = sbr.rel target = $region3
    $region8: #{tpu_custom_call.1} parent=1 // loop_exit
      _
    %2835 = vsyncpa [#allocation7], 1
    %s2836 = scalar_lea.sflag [#allocation7], 1
    %2837 = vsyncpa %s2836, 1
    %2838 = vsyncpa [#allocation10], 1
    %2839 = vsyncpa [#allocation13], 1
    %s2840 = scalar_lea.sflag [#allocation13], 1
    %2841 = vsyncpa %s2840, 1
    %2842 = vsyncpa [#allocation8], 1
    %s2843 = scalar_lea.sflag [#allocation8], 1
    %2844 = vsyncpa %s2843, 1

</llo_original>
